<compile_context>
chip_gen: v7x
topology: tpu7x:2x2x1
jax: 0.10.0
libtpu: 0.0.40
codegen_flags: <defaults>
</compile_context>

<pallas_src>
import math
import functools

import jax
import jax.numpy as jnp
import numpy as np
from jax import lax
from jax.experimental import pallas as pl
from jax.experimental.pallas import tpu as pltpu


def _round_up(x, m):
    return (x + m - 1) // m * m


def _gru_chunk_kernel(len_ref, gx_ref, whh_ref, bhhn_ref,
                      out_ref, hid_ref, h_scratch, *, tc, hp):
    """Grid = (batch_tiles, time_chunks). One grid step runs `tc` timesteps for
    one batch tile. The recurrent state is carried in f32 VMEM scratch."""
    c = pl.program_id(1)

    @pl.when(c == 0)
    def _():
        h_scratch[...] = jnp.zeros_like(h_scratch)

    w = whh_ref[...]            # (Hp, 3Hp) fused recurrent weight (compute dtype)
    bn = bhhn_ref[...]          # (1, Hp) f32  (b_hh for the n gate)
    lens = len_ref[...]         # (bt, 1) int32
    h = h_scratch[...]          # (bt, Hp) f32

    # Static unroll over the chunk: indices are compile-time constants, each
    # iteration = one fused (bt,Hp)x(Hp,3Hp) MXU matmul + f32 VPU/EUP gate math.
    for tt in range(tc):
        t = c * tc + tt
        gx = gx_ref[tt]                                    # (bt, 3Hp) input proj + folded biases
        gh = jnp.dot(h.astype(w.dtype), w,
                     preferred_element_type=jnp.float32)   # (bt, 3Hp) f32 accum
        r = jax.nn.sigmoid(gx[:, :hp].astype(jnp.float32) + gh[:, :hp])
        z = jax.nn.sigmoid(gx[:, hp:2 * hp].astype(jnp.float32) + gh[:, hp:2 * hp])
        n = jnp.tanh(gx[:, 2 * hp:].astype(jnp.float32) + r * (gh[:, 2 * hp:] + bn))
        h_new = n + z * (h - n)                            # == (1-z)*n + z*h
        valid = t < lens                                   # (bt, 1) bool
        h = jnp.where(valid, h_new, h)                     # freeze state past seq end
        out_ref[tt] = jnp.where(valid, h_new, 0.0).astype(out_ref.dtype)

    h_scratch[...] = h

    @pl.when(c == pl.num_programs(1) - 1)
    def _():
        hid_ref[...] = h


def gru_encoder_forward(x, seq_lengths, wih, whh, bih, bhh, *,
                        compute_dtype=jnp.float32, time_chunk=8, batch_tile=None):
    """x: (B, T, I) f32; seq_lengths: (B,) int.
    wih: (3, I, H), whh: (3, H, H), bih/bhh: (3, 1, H), gate order (r, z, n),
    weights pre-transposed (right-multiply layout).
    Returns (output (B, T, H) f32 zero-padded, hidden (1, B, H) f32)."""
    B, T, I = x.shape
    H = whh.shape[-1]
    f32 = jnp.float32

    Hp = _round_up(H, 128)            # lane-dense hidden dim
    Bp = _round_up(B, 8)              # sublane-dense batch
    tc = max(1, min(time_chunk, T))   # timesteps per grid step
    Tp = _round_up(T, tc)
    bt = Bp if batch_tile is None else batch_tile
    assert bt % 8 == 0 and Bp % bt == 0

    # --- fused, padded parameters -------------------------------------------
    wih_cat = jnp.zeros((I, 3 * Hp), f32)
    whh_cat = jnp.zeros((Hp, 3 * Hp), f32)
    bias_cat = jnp.zeros((1, 3 * Hp), f32)
    for g in range(3):
        wih_cat = wih_cat.at[:, g * Hp:g * Hp + H].set(wih[g].astype(f32))
        whh_cat = whh_cat.at[:H, g * Hp:g * Hp + H].set(whh[g].astype(f32))
    # Fold b_ih (all gates) and b_hh (r, z gates) into the input projection;
    # b_hh_n must stay inside the recurrence because of the r * (.) term.
    bias_cat = bias_cat.at[:, 0 * Hp:0 * Hp + H].set((bih[0] + bhh[0]).reshape(1, H))
    bias_cat = bias_cat.at[:, 1 * Hp:1 * Hp + H].set((bih[1] + bhh[1]).reshape(1, H))
    bias_cat = bias_cat.at[:, 2 * Hp:2 * Hp + H].set(bih[2].reshape(1, H))
    bhh_n = jnp.zeros((1, Hp), f32).at[:, :H].set(bhh[2].reshape(1, H))

    # --- hoisted input projection: one big (B*T, I) x (I, 3Hp) matmul --------
    gx = jnp.dot(x.reshape(B * T, I).astype(f32), wih_cat,
                 precision=lax.Precision.HIGHEST) + bias_cat
    gx = gx.reshape(B, T, 3 * Hp)
    gx = jnp.pad(gx, ((0, Bp - B), (0, Tp - T), (0, 0)))
    gx = jnp.transpose(gx, (1, 0, 2)).astype(compute_dtype)    # (Tp, Bp, 3Hp) time-major

    lens = jnp.zeros((Bp, 1), jnp.int32).at[:B, 0].set(seq_lengths.astype(jnp.int32))
    whh_cat = whh_cat.astype(compute_dtype)

    n_bt = Bp // bt
    n_ck = Tp // tc

    grid_spec = pltpu.PrefetchScalarGridSpec(
        num_scalar_prefetch=0,
        grid=(n_bt, n_ck),
        in_specs=[
            pl.BlockSpec((bt, 1), lambda b, c: (b, 0)),              # lengths
            pl.BlockSpec((tc, bt, 3 * Hp), lambda b, c: (c, b, 0)),  # Gx chunk
            pl.BlockSpec((Hp, 3 * Hp), lambda b, c: (0, 0)),         # fused W_hh (invariant)
            pl.BlockSpec((1, Hp), lambda b, c: (0, 0)),              # b_hh (n gate)
        ],
        out_specs=[
            pl.BlockSpec((tc, bt, Hp), lambda b, c: (c, b, 0)),      # output chunk (lane-dense)
            pl.BlockSpec((bt, Hp), lambda b, c: (b, 0)),             # final hidden (resident)
        ],
        scratch_shapes=[pltpu.VMEM((bt, Hp), jnp.float32)],          # carried h state (f32)
    )

    kernel = functools.partial(_gru_chunk_kernel, tc=tc, hp=Hp)
    out_tm, hidden = pl.pallas_call(
        kernel,
        out_shape=(
            jax.ShapeDtypeStruct((Tp, Bp, Hp), jnp.float32),
            jax.ShapeDtypeStruct((Bp, Hp), jnp.float32),
        ),
        grid_spec=grid_spec,
        compiler_params=pltpu.CompilerParams(
            # batch tiles are independent (megacore on v7x); time is serial.
            dimension_semantics=("parallel", "arbitrary")),
    )(lens, gx, whh_cat, bhh_n)

    output = jnp.transpose(out_tm, (1, 0, 2))[:B, :T, :H]   # back to batch_first
    hidden = hidden[None, :B, :H]                           # (1, B, H)
    return output, hidden


def gru_reference(x, seq_lengths, wih, whh, bih, bhh):
    """Pure-JAX reference matching PyTorch GRU + pack_padded_sequence masking."""
    B, T, I = x.shape
    H = whh.shape[-1]
    hi = lax.Precision.HIGHEST
    h = jnp.zeros((B, H), jnp.float32)
    outs = []
    for t in range(T):
        xt = x[:, t, :]
        r = jax.nn.sigmoid(jnp.dot(xt, wih[0], precision=hi) + bih[0]
                           + jnp.dot(h, whh[0], precision=hi) + bhh[0])
        z = jax.nn.sigmoid(jnp.dot(xt, wih[1], precision=hi) + bih[1]
                           + jnp.dot(h, whh[1], precision=hi) + bhh[1])
        n = jnp.tanh(jnp.dot(xt, wih[2], precision=hi) + bih[2]
                     + r * (jnp.dot(h, whh[2], precision=hi) + bhh[2]))
        h_new = (1.0 - z) * n + z * h
        mask = (t < seq_lengths)[:, None].astype(jnp.float32)
        h = mask * h_new + (1.0 - mask) * h
        outs.append(mask * h_new)
    return jnp.stack(outs, axis=1), h[None]


def init_params(key, input_dim, hidden_dim):
    """Deterministic init mirroring nn.GRU's U(-1/sqrt(H), 1/sqrt(H)) shapes.
    Stored pre-transposed & split per gate: wih (3,I,H), whh (3,H,H), biases (3,1,H)."""
    bound = 1.0 / math.sqrt(hidden_dim)
    k1, k2, k3, k4 = jax.random.split(key, 4)
    wih = jax.random.uniform(k1, (3, input_dim, hidden_dim), jnp.float32, -bound, bound)
    whh = jax.random.uniform(k2, (3, hidden_dim, hidden_dim), jnp.float32, -bound, bound)
    bih = jax.random.uniform(k3, (3, 1, hidden_dim), jnp.float32, -bound, bound)
    bhh = jax.random.uniform(k4, (3, 1, hidden_dim), jnp.float32, -bound, bound)
    return wih, whh, bih, bhh


if __name__ == "__main__":
    B, T, INPUT_DIM, HIDDEN_DIM = 2, 8, 4, 32

    root = jax.random.PRNGKey(0)
    k_x, k_p = jax.random.split(root)
    x = jax.random.normal(k_x, (B, T, INPUT_DIM), jnp.float32)
    seq_lengths = jnp.array([8, 5], dtype=jnp.int32)   # enforce_sorted=False: any order ok

    wih, whh, bih, bhh = init_params(k_p, INPUT_DIM, HIDDEN_DIM)

    ref_out, ref_hid = gru_reference(x, seq_lengths, wih, whh, bih, bhh)

    # f32 path: tight tolerance.
    fwd_f32 = jax.jit(functools.partial(gru_encoder_forward,
                                        compute_dtype=jnp.float32, time_chunk=8))
    output, hidden = fwd_f32(x, seq_lengths, wih, whh, bih, bhh)
    output = jax.block_until_ready(output)
    hidden = jax.block_until_ready(hidden)
    np.testing.assert_allclose(np.asarray(output), np.asarray(ref_out), rtol=2e-5, atol=2e-5)
    np.testing.assert_allclose(np.asarray(hidden), np.asarray(ref_hid), rtol=2e-5, atol=2e-5)
    assert output.shape == (B, T, HIDDEN_DIM)
    assert hidden.shape == (1, B, HIDDEN_DIM)

    # bf16 weights / Gx stream (production setting): loose tolerance.
    fwd_bf16 = jax.jit(functools.partial(gru_encoder_forward,
                                         compute_dtype=jnp.bfloat16, time_chunk=8))
    out_bf, hid_bf = fwd_bf16(x, seq_lengths, wih, whh, bih, bhh)
    out_bf = jax.block_until_ready(out_bf)
    hid_bf = jax.block_until_ready(hid_bf)
    np.testing.assert_allclose(np.asarray(out_bf), np.asarray(ref_out), rtol=5e-2, atol=5e-2)
    np.testing.assert_allclose(np.asarray(hid_bf), np.asarray(ref_hid), rtol=5e-2, atol=5e-2)

    print("KERNEL_OK")
</pallas_src>

<mosaic_0001>
module attributes {stable_mosaic.version = 11 : i64} {
  func.func @_gru_chunk_kernel(%arg0: i32, %arg1: i32, %arg2: memref<8x1xi32, #tpu.memory_space<vmem>>, %arg3: memref<8x8x384xf32, #tpu.memory_space<vmem>>, %arg4: memref<128x384xf32, #tpu.memory_space<vmem>>, %arg5: memref<1x128xf32, #tpu.memory_space<vmem>>, %arg6: memref<8x8x128xf32, #tpu.memory_space<vmem>>, %arg7: memref<8x128xf32, #tpu.memory_space<vmem>>, %arg8: memref<8x128xf32, #tpu.memory_space<vmem>>) attributes {dimension_semantics = [#tpu.dimension_semantics<parallel>, #tpu.dimension_semantics<arbitrary>], iteration_bounds = array<i64: 1, 1>, scalar_prefetch = 0 : i64, scratch_operands = 1 : i64, tpu.core_type = #tpu.core_type<tc>, window_params = [{transform_indices = @transform_0, window_bounds = array<i64: 8, 1>}, {transform_indices = @transform_1, window_bounds = array<i64: 8, 8, 384>}, {pipeline_mode = #tpu.pipeline_mode<synchronous>, transform_indices = @transform_2, window_bounds = array<i64: 128, 384>}, {pipeline_mode = #tpu.pipeline_mode<synchronous>, transform_indices = @transform_3, window_bounds = array<i64: 1, 128>}, {transform_indices = @transform_4, window_bounds = array<i64: 8, 8, 128>}, {transform_indices = @transform_5, window_bounds = array<i64: 8, 128>}]} {
    %c0_i32 = arith.constant 0 : i32
    %0 = arith.cmpi eq, %arg1, %c0_i32 : i32
    %1 = arith.extui %0 : i1 to i32
    %c0_i32_0 = arith.constant 0 : i32
    %2 = arith.cmpi ne, %1, %c0_i32_0 : i32
    scf.if %2 {
      %cst_92 = arith.constant 0.000000e+00 : f32
      %355 = vector.broadcast %cst_92 : f32 to vector<8x128xf32>
      %c0_93 = arith.constant 0 : index
      %c0_94 = arith.constant 0 : index
      %356 = vector.load %arg8[%c0_93, %c0_94] : memref<8x128xf32, #tpu.memory_space<vmem>>, vector<8x128xf32>
      tpu.vector_store %arg8[%c0_93, %c0_94], %355 {strides = array<i32>} : memref<8x128xf32, #tpu.memory_space<vmem>>, vector<8x128xf32>,
    } else {
    }
    %c0 = arith.constant 0 : index
    %c0_1 = arith.constant 0 : index
    %3 = vector.load %arg4[%c0, %c0_1] : memref<128x384xf32, #tpu.memory_space<vmem>>, vector<128x384xf32>
    %c0_2 = arith.constant 0 : index
    %c0_3 = arith.constant 0 : index
    %4 = vector.load %arg5[%c0_2, %c0_3] : memref<1x128xf32, #tpu.memory_space<vmem>>, vector<1x128xf32>
    %c0_4 = arith.constant 0 : index
    %c0_5 = arith.constant 0 : index
    %5 = vector.load %arg2[%c0_4, %c0_5] : memref<8x1xi32, #tpu.memory_space<vmem>>, vector<8x1xi32>
    %c0_6 = arith.constant 0 : index
    %c0_7 = arith.constant 0 : index
    %6 = vector.load %arg8[%c0_6, %c0_7] : memref<8x128xf32, #tpu.memory_space<vmem>>, vector<8x128xf32>
    %c8_i32 = arith.constant 8 : i32
    %7 = arith.muli %arg1, %c8_i32 : i32
    %c0_i32_8 = arith.constant 0 : i32
    %8 = arith.addi %7, %c0_i32_8 : i32
    %c0_9 = arith.constant 0 : index
    %c0_10 = arith.constant 0 : index
    %c0_11 = arith.constant 0 : index
    %9 = vector.load %arg3[%c0_9, %c0_10, %c0_11] : memref<8x8x384xf32, #tpu.memory_space<vmem>>, vector<1x8x384xf32>
    %10 = vector.shape_cast %9 : vector<1x8x384xf32> to vector<8x384xf32>
    %cst = arith.constant dense<0.000000e+00> : vector<8x384xf32>
    %11 = tpu.matmul %6, %3, %cst {dimension_numbers = #tpu.dot_dimension_numbers<[1], [0], [0], [1], [0, 0, 1, 1], [], []>} : vector<8x128xf32>, vector<128x384xf32>, vector<8x384xf32> -> vector<8x384xf32>
    %12 = vector.extract_strided_slice %10 {offsets = [0, 0], sizes = [8, 128], strides = [1, 1]} : vector<8x384xf32> to vector<8x128xf32>
    %13 = vector.extract_strided_slice %11 {offsets = [0, 0], sizes = [8, 128], strides = [1, 1]} : vector<8x384xf32> to vector<8x128xf32>
    %14 = arith.addf %12, %13 : vector<8x128xf32>
    %15 = arith.negf %14 : vector<8x128xf32>
    %16 = math.exp %15 : vector<8x128xf32>
    %cst_12 = arith.constant 1.000000e+00 : f32
    %17 = vector.broadcast %cst_12 : f32 to vector<8x128xf32>
    %18 = arith.addf %17, %16 : vector<8x128xf32>
    %19 = arith.divf %17, %18 : vector<8x128xf32>
    %20 = vector.extract_strided_slice %10 {offsets = [0, 128], sizes = [8, 128], strides = [1, 1]} : vector<8x384xf32> to vector<8x128xf32>
    %21 = vector.extract_strided_slice %11 {offsets = [0, 128], sizes = [8, 128], strides = [1, 1]} : vector<8x384xf32> to vector<8x128xf32>
    %22 = arith.addf %20, %21 : vector<8x128xf32>
    %23 = arith.negf %22 : vector<8x128xf32>
    %24 = math.exp %23 : vector<8x128xf32>
    %cst_13 = arith.constant 1.000000e+00 : f32
    %25 = vector.broadcast %cst_13 : f32 to vector<8x128xf32>
    %26 = arith.addf %25, %24 : vector<8x128xf32>
    %27 = arith.divf %25, %26 : vector<8x128xf32>
    %28 = vector.extract_strided_slice %10 {offsets = [0, 256], sizes = [8, 128], strides = [1, 1]} : vector<8x384xf32> to vector<8x128xf32>
    %29 = vector.extract_strided_slice %11 {offsets = [0, 256], sizes = [8, 128], strides = [1, 1]} : vector<8x384xf32> to vector<8x128xf32>
    %30 = vector.broadcast %4 : vector<1x128xf32> to vector<8x128xf32>
    %31 = arith.addf %29, %30 : vector<8x128xf32>
    %32 = arith.mulf %19, %31 : vector<8x128xf32>
    %33 = arith.addf %28, %32 : vector<8x128xf32>
    %34 = math.tanh %33 : vector<8x128xf32>
    %35 = arith.subf %6, %34 : vector<8x128xf32>
    %36 = arith.mulf %27, %35 : vector<8x128xf32>
    %37 = arith.addf %34, %36 : vector<8x128xf32>
    %38 = vector.broadcast %8 : i32 to vector<8x1xi32>
    %39 = arith.cmpi slt, %38, %5 : vector<8x1xi32>
    %40 = vector.shape_cast %39 : vector<8x1xi1> to vector<8x1xi1>
    %41 = vector.broadcast %40 : vector<8x1xi1> to vector<8x128xi1>
    %42 = arith.select %41, %37, %6 : vector<8x128xi1>, vector<8x128xf32>
    %cst_14 = arith.constant 0.000000e+00 : f32
    %43 = vector.shape_cast %39 : vector<8x1xi1> to vector<8x1xi1>
    %44 = vector.broadcast %43 : vector<8x1xi1> to vector<8x128xi1>
    %45 = vector.broadcast %cst_14 : f32 to vector<8x128xf32>
    %46 = arith.select %44, %37, %45 : vector<8x128xi1>, vector<8x128xf32>
    %c0_15 = arith.constant 0 : index
    %c0_16 = arith.constant 0 : index
    %c0_17 = arith.constant 0 : index
    %47 = vector.load %arg6[%c0_15, %c0_16, %c0_17] : memref<8x8x128xf32, #tpu.memory_space<vmem>>, vector<1x8x128xf32>
    %48 = vector.shape_cast %47 : vector<1x8x128xf32> to vector<8x128xf32>
    %49 = vector.shape_cast %46 : vector<8x128xf32> to vector<1x8x128xf32>
    tpu.vector_store %arg6[%c0_15, %c0_16, %c0_17], %49 {strides = array<i32>} : memref<8x8x128xf32, #tpu.memory_space<vmem>>, vector<1x8x128xf32>,
    %c8_i32_18 = arith.constant 8 : i32
    %50 = arith.muli %arg1, %c8_i32_18 : i32
    %c1_i32 = arith.constant 1 : i32
    %51 = arith.addi %50, %c1_i32 : i32
    %c1 = arith.constant 1 : index
    %c0_19 = arith.constant 0 : index
    %c0_20 = arith.constant 0 : index
    %52 = vector.load %arg3[%c1, %c0_19, %c0_20] : memref<8x8x384xf32, #tpu.memory_space<vmem>>, vector<1x8x384xf32>
    %53 = vector.shape_cast %52 : vector<1x8x384xf32> to vector<8x384xf32>
    %cst_21 = arith.constant dense<0.000000e+00> : vector<8x384xf32>
    %54 = tpu.matmul %42, %3, %cst_21 {dimension_numbers = #tpu.dot_dimension_numbers<[1], [0], [0], [1], [0, 0, 1, 1], [], []>} : vector<8x128xf32>, vector<128x384xf32>, vector<8x384xf32> -> vector<8x384xf32>
    %55 = vector.extract_strided_slice %53 {offsets = [0, 0], sizes = [8, 128], strides = [1, 1]} : vector<8x384xf32> to vector<8x128xf32>
    %56 = vector.extract_strided_slice %54 {offsets = [0, 0], sizes = [8, 128], strides = [1, 1]} : vector<8x384xf32> to vector<8x128xf32>
    %57 = arith.addf %55, %56 : vector<8x128xf32>
    %58 = arith.negf %57 : vector<8x128xf32>
    %59 = math.exp %58 : vector<8x128xf32>
    %cst_22 = arith.constant 1.000000e+00 : f32
    %60 = vector.broadcast %cst_22 : f32 to vector<8x128xf32>
    %61 = arith.addf %60, %59 : vector<8x128xf32>
    %62 = arith.divf %60, %61 : vector<8x128xf32>
    %63 = vector.extract_strided_slice %53 {offsets = [0, 128], sizes = [8, 128], strides = [1, 1]} : vector<8x384xf32> to vector<8x128xf32>
    %64 = vector.extract_strided_slice %54 {offsets = [0, 128], sizes = [8, 128], strides = [1, 1]} : vector<8x384xf32> to vector<8x128xf32>
    %65 = arith.addf %63, %64 : vector<8x128xf32>
    %66 = arith.negf %65 : vector<8x128xf32>
    %67 = math.exp %66 : vector<8x128xf32>
    %cst_23 = arith.constant 1.000000e+00 : f32
    %68 = vector.broadcast %cst_23 : f32 to vector<8x128xf32>
    %69 = arith.addf %68, %67 : vector<8x128xf32>
    %70 = arith.divf %68, %69 : vector<8x128xf32>
    %71 = vector.extract_strided_slice %53 {offsets = [0, 256], sizes = [8, 128], strides = [1, 1]} : vector<8x384xf32> to vector<8x128xf32>
    %72 = vector.extract_strided_slice %54 {offsets = [0, 256], sizes = [8, 128], strides = [1, 1]} : vector<8x384xf32> to vector<8x128xf32>
    %73 = vector.broadcast %4 : vector<1x128xf32> to vector<8x128xf32>
    %74 = arith.addf %72, %73 : vector<8x128xf32>
    %75 = arith.mulf %62, %74 : vector<8x128xf32>
    %76 = arith.addf %71, %75 : vector<8x128xf32>
    %77 = math.tanh %76 : vector<8x128xf32>
    %78 = arith.subf %42, %77 : vector<8x128xf32>
    %79 = arith.mulf %70, %78 : vector<8x128xf32>
    %80 = arith.addf %77, %79 : vector<8x128xf32>
    %81 = vector.broadcast %51 : i32 to vector<8x1xi32>
    %82 = arith.cmpi slt, %81, %5 : vector<8x1xi32>
    %83 = vector.shape_cast %82 : vector<8x1xi1> to vector<8x1xi1>
    %84 = vector.broadcast %83 : vector<8x1xi1> to vector<8x128xi1>
    %85 = arith.select %84, %80, %42 : vector<8x128xi1>, vector<8x128xf32>
    %cst_24 = arith.constant 0.000000e+00 : f32
    %86 = vector.shape_cast %82 : vector<8x1xi1> to vector<8x1xi1>
    %87 = vector.broadcast %86 : vector<8x1xi1> to vector<8x128xi1>
    %88 = vector.broadcast %cst_24 : f32 to vector<8x128xf32>
    %89 = arith.select %87, %80, %88 : vector<8x128xi1>, vector<8x128xf32>
    %c1_25 = arith.constant 1 : index
    %c0_26 = arith.constant 0 : index
    %c0_27 = arith.constant 0 : index
    %90 = vector.load %arg6[%c1_25, %c0_26, %c0_27] : memref<8x8x128xf32, #tpu.memory_space<vmem>>, vector<1x8x128xf32>
    %91 = vector.shape_cast %90 : vector<1x8x128xf32> to vector<8x128xf32>
    %92 = vector.shape_cast %89 : vector<8x128xf32> to vector<1x8x128xf32>
    tpu.vector_store %arg6[%c1_25, %c0_26, %c0_27], %92 {strides = array<i32>} : memref<8x8x128xf32, #tpu.memory_space<vmem>>, vector<1x8x128xf32>,
    %c8_i32_28 = arith.constant 8 : i32
    %93 = arith.muli %arg1, %c8_i32_28 : i32
    %c2_i32 = arith.constant 2 : i32
    %94 = arith.addi %93, %c2_i32 : i32
    %c2 = arith.constant 2 : index
    %c0_29 = arith.constant 0 : index
    %c0_30 = arith.constant 0 : index
    %95 = vector.load %arg3[%c2, %c0_29, %c0_30] : memref<8x8x384xf32, #tpu.memory_space<vmem>>, vector<1x8x384xf32>
    %96 = vector.shape_cast %95 : vector<1x8x384xf32> to vector<8x384xf32>
    %cst_31 = arith.constant dense<0.000000e+00> : vector<8x384xf32>
    %97 = tpu.matmul %85, %3, %cst_31 {dimension_numbers = #tpu.dot_dimension_numbers<[1], [0], [0], [1], [0, 0, 1, 1], [], []>} : vector<8x128xf32>, vector<128x384xf32>, vector<8x384xf32> -> vector<8x384xf32>
    %98 = vector.extract_strided_slice %96 {offsets = [0, 0], sizes = [8, 128], strides = [1, 1]} : vector<8x384xf32> to vector<8x128xf32>
    %99 = vector.extract_strided_slice %97 {offsets = [0, 0], sizes = [8, 128], strides = [1, 1]} : vector<8x384xf32> to vector<8x128xf32>
    %100 = arith.addf %98, %99 : vector<8x128xf32>
    %101 = arith.negf %100 : vector<8x128xf32>
    %102 = math.exp %101 : vector<8x128xf32>
    %cst_32 = arith.constant 1.000000e+00 : f32
    %103 = vector.broadcast %cst_32 : f32 to vector<8x128xf32>
    %104 = arith.addf %103, %102 : vector<8x128xf32>
    %105 = arith.divf %103, %104 : vector<8x128xf32>
    %106 = vector.extract_strided_slice %96 {offsets = [0, 128], sizes = [8, 128], strides = [1, 1]} : vector<8x384xf32> to vector<8x128xf32>
    %107 = vector.extract_strided_slice %97 {offsets = [0, 128], sizes = [8, 128], strides = [1, 1]} : vector<8x384xf32> to vector<8x128xf32>
    %108 = arith.addf %106, %107 : vector<8x128xf32>
    %109 = arith.negf %108 : vector<8x128xf32>
    %110 = math.exp %109 : vector<8x128xf32>
    %cst_33 = arith.constant 1.000000e+00 : f32
    %111 = vector.broadcast %cst_33 : f32 to vector<8x128xf32>
    %112 = arith.addf %111, %110 : vector<8x128xf32>
    %113 = arith.divf %111, %112 : vector<8x128xf32>
    %114 = vector.extract_strided_slice %96 {offsets = [0, 256], sizes = [8, 128], strides = [1, 1]} : vector<8x384xf32> to vector<8x128xf32>
    %115 = vector.extract_strided_slice %97 {offsets = [0, 256], sizes = [8, 128], strides = [1, 1]} : vector<8x384xf32> to vector<8x128xf32>
    %116 = vector.broadcast %4 : vector<1x128xf32> to vector<8x128xf32>
    %117 = arith.addf %115, %116 : vector<8x128xf32>
    %118 = arith.mulf %105, %117 : vector<8x128xf32>
    %119 = arith.addf %114, %118 : vector<8x128xf32>
    %120 = math.tanh %119 : vector<8x128xf32>
    %121 = arith.subf %85, %120 : vector<8x128xf32>
    %122 = arith.mulf %113, %121 : vector<8x128xf32>
    %123 = arith.addf %120, %122 : vector<8x128xf32>
    %124 = vector.broadcast %94 : i32 to vector<8x1xi32>
    %125 = arith.cmpi slt, %124, %5 : vector<8x1xi32>
    %126 = vector.shape_cast %125 : vector<8x1xi1> to vector<8x1xi1>
    %127 = vector.broadcast %126 : vector<8x1xi1> to vector<8x128xi1>
    %128 = arith.select %127, %123, %85 : vector<8x128xi1>, vector<8x128xf32>
    %cst_34 = arith.constant 0.000000e+00 : f32
    %129 = vector.shape_cast %125 : vector<8x1xi1> to vector<8x1xi1>
    %130 = vector.broadcast %129 : vector<8x1xi1> to vector<8x128xi1>
    %131 = vector.broadcast %cst_34 : f32 to vector<8x128xf32>
    %132 = arith.select %130, %123, %131 : vector<8x128xi1>, vector<8x128xf32>
    %c2_35 = arith.constant 2 : index
    %c0_36 = arith.constant 0 : index
    %c0_37 = arith.constant 0 : index
    %133 = vector.load %arg6[%c2_35, %c0_36, %c0_37] : memref<8x8x128xf32, #tpu.memory_space<vmem>>, vector<1x8x128xf32>
    %134 = vector.shape_cast %133 : vector<1x8x128xf32> to vector<8x128xf32>
    %135 = vector.shape_cast %132 : vector<8x128xf32> to vector<1x8x128xf32>
    tpu.vector_store %arg6[%c2_35, %c0_36, %c0_37], %135 {strides = array<i32>} : memref<8x8x128xf32, #tpu.memory_space<vmem>>, vector<1x8x128xf32>,
    %c8_i32_38 = arith.constant 8 : i32
    %136 = arith.muli %arg1, %c8_i32_38 : i32
    %c3_i32 = arith.constant 3 : i32
    %137 = arith.addi %136, %c3_i32 : i32
    %c3 = arith.constant 3 : index
    %c0_39 = arith.constant 0 : index
    %c0_40 = arith.constant 0 : index
    %138 = vector.load %arg3[%c3, %c0_39, %c0_40] : memref<8x8x384xf32, #tpu.memory_space<vmem>>, vector<1x8x384xf32>
    %139 = vector.shape_cast %138 : vector<1x8x384xf32> to vector<8x384xf32>
    %cst_41 = arith.constant dense<0.000000e+00> : vector<8x384xf32>
    %140 = tpu.matmul %128, %3, %cst_41 {dimension_numbers = #tpu.dot_dimension_numbers<[1], [0], [0], [1], [0, 0, 1, 1], [], []>} : vector<8x128xf32>, vector<128x384xf32>, vector<8x384xf32> -> vector<8x384xf32>
    %141 = vector.extract_strided_slice %139 {offsets = [0, 0], sizes = [8, 128], strides = [1, 1]} : vector<8x384xf32> to vector<8x128xf32>
    %142 = vector.extract_strided_slice %140 {offsets = [0, 0], sizes = [8, 128], strides = [1, 1]} : vector<8x384xf32> to vector<8x128xf32>
    %143 = arith.addf %141, %142 : vector<8x128xf32>
    %144 = arith.negf %143 : vector<8x128xf32>
    %145 = math.exp %144 : vector<8x128xf32>
    %cst_42 = arith.constant 1.000000e+00 : f32
    %146 = vector.broadcast %cst_42 : f32 to vector<8x128xf32>
    %147 = arith.addf %146, %145 : vector<8x128xf32>
    %148 = arith.divf %146, %147 : vector<8x128xf32>
    %149 = vector.extract_strided_slice %139 {offsets = [0, 128], sizes = [8, 128], strides = [1, 1]} : vector<8x384xf32> to vector<8x128xf32>
    %150 = vector.extract_strided_slice %140 {offsets = [0, 128], sizes = [8, 128], strides = [1, 1]} : vector<8x384xf32> to vector<8x128xf32>
    %151 = arith.addf %149, %150 : vector<8x128xf32>
    %152 = arith.negf %151 : vector<8x128xf32>
    %153 = math.exp %152 : vector<8x128xf32>
    %cst_43 = arith.constant 1.000000e+00 : f32
    %154 = vector.broadcast %cst_43 : f32 to vector<8x128xf32>
    %155 = arith.addf %154, %153 : vector<8x128xf32>
    %156 = arith.divf %154, %155 : vector<8x128xf32>
    %157 = vector.extract_strided_slice %139 {offsets = [0, 256], sizes = [8, 128], strides = [1, 1]} : vector<8x384xf32> to vector<8x128xf32>
    %158 = vector.extract_strided_slice %140 {offsets = [0, 256], sizes = [8, 128], strides = [1, 1]} : vector<8x384xf32> to vector<8x128xf32>
    %159 = vector.broadcast %4 : vector<1x128xf32> to vector<8x128xf32>
    %160 = arith.addf %158, %159 : vector<8x128xf32>
    %161 = arith.mulf %148, %160 : vector<8x128xf32>
    %162 = arith.addf %157, %161 : vector<8x128xf32>
    %163 = math.tanh %162 : vector<8x128xf32>
    %164 = arith.subf %128, %163 : vector<8x128xf32>
    %165 = arith.mulf %156, %164 : vector<8x128xf32>
    %166 = arith.addf %163, %165 : vector<8x128xf32>
    %167 = vector.broadcast %137 : i32 to vector<8x1xi32>
    %168 = arith.cmpi slt, %167, %5 : vector<8x1xi32>
    %169 = vector.shape_cast %168 : vector<8x1xi1> to vector<8x1xi1>
    %170 = vector.broadcast %169 : vector<8x1xi1> to vector<8x128xi1>
    %171 = arith.select %170, %166, %128 : vector<8x128xi1>, vector<8x128xf32>
    %cst_44 = arith.constant 0.000000e+00 : f32
    %172 = vector.shape_cast %168 : vector<8x1xi1> to vector<8x1xi1>
    %173 = vector.broadcast %172 : vector<8x1xi1> to vector<8x128xi1>
    %174 = vector.broadcast %cst_44 : f32 to vector<8x128xf32>
    %175 = arith.select %173, %166, %174 : vector<8x128xi1>, vector<8x128xf32>
    %c3_45 = arith.constant 3 : index
    %c0_46 = arith.constant 0 : index
    %c0_47 = arith.constant 0 : index
    %176 = vector.load %arg6[%c3_45, %c0_46, %c0_47] : memref<8x8x128xf32, #tpu.memory_space<vmem>>, vector<1x8x128xf32>
    %177 = vector.shape_cast %176 : vector<1x8x128xf32> to vector<8x128xf32>
    %178 = vector.shape_cast %175 : vector<8x128xf32> to vector<1x8x128xf32>
    tpu.vector_store %arg6[%c3_45, %c0_46, %c0_47], %178 {strides = array<i32>} : memref<8x8x128xf32, #tpu.memory_space<vmem>>, vector<1x8x128xf32>,
    %c8_i32_48 = arith.constant 8 : i32
    %179 = arith.muli %arg1, %c8_i32_48 : i32
    %c4_i32 = arith.constant 4 : i32
    %180 = arith.addi %179, %c4_i32 : i32
    %c4 = arith.constant 4 : index
    %c0_49 = arith.constant 0 : index
    %c0_50 = arith.constant 0 : index
    %181 = vector.load %arg3[%c4, %c0_49, %c0_50] : memref<8x8x384xf32, #tpu.memory_space<vmem>>, vector<1x8x384xf32>
    %182 = vector.shape_cast %181 : vector<1x8x384xf32> to vector<8x384xf32>
    %cst_51 = arith.constant dense<0.000000e+00> : vector<8x384xf32>
    %183 = tpu.matmul %171, %3, %cst_51 {dimension_numbers = #tpu.dot_dimension_numbers<[1], [0], [0], [1], [0, 0, 1, 1], [], []>} : vector<8x128xf32>, vector<128x384xf32>, vector<8x384xf32> -> vector<8x384xf32>
    %184 = vector.extract_strided_slice %182 {offsets = [0, 0], sizes = [8, 128], strides = [1, 1]} : vector<8x384xf32> to vector<8x128xf32>
    %185 = vector.extract_strided_slice %183 {offsets = [0, 0], sizes = [8, 128], strides = [1, 1]} : vector<8x384xf32> to vector<8x128xf32>
    %186 = arith.addf %184, %185 : vector<8x128xf32>
    %187 = arith.negf %186 : vector<8x128xf32>
    %188 = math.exp %187 : vector<8x128xf32>
    %cst_52 = arith.constant 1.000000e+00 : f32
    %189 = vector.broadcast %cst_52 : f32 to vector<8x128xf32>
    %190 = arith.addf %189, %188 : vector<8x128xf32>
    %191 = arith.divf %189, %190 : vector<8x128xf32>
    %192 = vector.extract_strided_slice %182 {offsets = [0, 128], sizes = [8, 128], strides = [1, 1]} : vector<8x384xf32> to vector<8x128xf32>
    %193 = vector.extract_strided_slice %183 {offsets = [0, 128], sizes = [8, 128], strides = [1, 1]} : vector<8x384xf32> to vector<8x128xf32>
    %194 = arith.addf %192, %193 : vector<8x128xf32>
    %195 = arith.negf %194 : vector<8x128xf32>
    %196 = math.exp %195 : vector<8x128xf32>
    %cst_53 = arith.constant 1.000000e+00 : f32
    %197 = vector.broadcast %cst_53 : f32 to vector<8x128xf32>
    %198 = arith.addf %197, %196 : vector<8x128xf32>
    %199 = arith.divf %197, %198 : vector<8x128xf32>
    %200 = vector.extract_strided_slice %182 {offsets = [0, 256], sizes = [8, 128], strides = [1, 1]} : vector<8x384xf32> to vector<8x128xf32>
    %201 = vector.extract_strided_slice %183 {offsets = [0, 256], sizes = [8, 128], strides = [1, 1]} : vector<8x384xf32> to vector<8x128xf32>
    %202 = vector.broadcast %4 : vector<1x128xf32> to vector<8x128xf32>
    %203 = arith.addf %201, %202 : vector<8x128xf32>
    %204 = arith.mulf %191, %203 : vector<8x128xf32>
    %205 = arith.addf %200, %204 : vector<8x128xf32>
    %206 = math.tanh %205 : vector<8x128xf32>
    %207 = arith.subf %171, %206 : vector<8x128xf32>
    %208 = arith.mulf %199, %207 : vector<8x128xf32>
    %209 = arith.addf %206, %208 : vector<8x128xf32>
    %210 = vector.broadcast %180 : i32 to vector<8x1xi32>
    %211 = arith.cmpi slt, %210, %5 : vector<8x1xi32>
    %212 = vector.shape_cast %211 : vector<8x1xi1> to vector<8x1xi1>
    %213 = vector.broadcast %212 : vector<8x1xi1> to vector<8x128xi1>
    %214 = arith.select %213, %209, %171 : vector<8x128xi1>, vector<8x128xf32>
    %cst_54 = arith.constant 0.000000e+00 : f32
    %215 = vector.shape_cast %211 : vector<8x1xi1> to vector<8x1xi1>
    %216 = vector.broadcast %215 : vector<8x1xi1> to vector<8x128xi1>
    %217 = vector.broadcast %cst_54 : f32 to vector<8x128xf32>
    %218 = arith.select %216, %209, %217 : vector<8x128xi1>, vector<8x128xf32>
    %c4_55 = arith.constant 4 : index
    %c0_56 = arith.constant 0 : index
    %c0_57 = arith.constant 0 : index
    %219 = vector.load %arg6[%c4_55, %c0_56, %c0_57] : memref<8x8x128xf32, #tpu.memory_space<vmem>>, vector<1x8x128xf32>
    %220 = vector.shape_cast %219 : vector<1x8x128xf32> to vector<8x128xf32>
    %221 = vector.shape_cast %218 : vector<8x128xf32> to vector<1x8x128xf32>
    tpu.vector_store %arg6[%c4_55, %c0_56, %c0_57], %221 {strides = array<i32>} : memref<8x8x128xf32, #tpu.memory_space<vmem>>, vector<1x8x128xf32>,
    %c8_i32_58 = arith.constant 8 : i32
    %222 = arith.muli %arg1, %c8_i32_58 : i32
    %c5_i32 = arith.constant 5 : i32
    %223 = arith.addi %222, %c5_i32 : i32
    %c5 = arith.constant 5 : index
    %c0_59 = arith.constant 0 : index
    %c0_60 = arith.constant 0 : index
    %224 = vector.load %arg3[%c5, %c0_59, %c0_60] : memref<8x8x384xf32, #tpu.memory_space<vmem>>, vector<1x8x384xf32>
    %225 = vector.shape_cast %224 : vector<1x8x384xf32> to vector<8x384xf32>
    %cst_61 = arith.constant dense<0.000000e+00> : vector<8x384xf32>
    %226 = tpu.matmul %214, %3, %cst_61 {dimension_numbers = #tpu.dot_dimension_numbers<[1], [0], [0], [1], [0, 0, 1, 1], [], []>} : vector<8x128xf32>, vector<128x384xf32>, vector<8x384xf32> -> vector<8x384xf32>
    %227 = vector.extract_strided_slice %225 {offsets = [0, 0], sizes = [8, 128], strides = [1, 1]} : vector<8x384xf32> to vector<8x128xf32>
    %228 = vector.extract_strided_slice %226 {offsets = [0, 0], sizes = [8, 128], strides = [1, 1]} : vector<8x384xf32> to vector<8x128xf32>
    %229 = arith.addf %227, %228 : vector<8x128xf32>
    %230 = arith.negf %229 : vector<8x128xf32>
    %231 = math.exp %230 : vector<8x128xf32>
    %cst_62 = arith.constant 1.000000e+00 : f32
    %232 = vector.broadcast %cst_62 : f32 to vector<8x128xf32>
    %233 = arith.addf %232, %231 : vector<8x128xf32>
    %234 = arith.divf %232, %233 : vector<8x128xf32>
    %235 = vector.extract_strided_slice %225 {offsets = [0, 128], sizes = [8, 128], strides = [1, 1]} : vector<8x384xf32> to vector<8x128xf32>
    %236 = vector.extract_strided_slice %226 {offsets = [0, 128], sizes = [8, 128], strides = [1, 1]} : vector<8x384xf32> to vector<8x128xf32>
    %237 = arith.addf %235, %236 : vector<8x128xf32>
    %238 = arith.negf %237 : vector<8x128xf32>
    %239 = math.exp %238 : vector<8x128xf32>
    %cst_63 = arith.constant 1.000000e+00 : f32
    %240 = vector.broadcast %cst_63 : f32 to vector<8x128xf32>
    %241 = arith.addf %240, %239 : vector<8x128xf32>
    %242 = arith.divf %240, %241 : vector<8x128xf32>
    %243 = vector.extract_strided_slice %225 {offsets = [0, 256], sizes = [8, 128], strides = [1, 1]} : vector<8x384xf32> to vector<8x128xf32>
    %244 = vector.extract_strided_slice %226 {offsets = [0, 256], sizes = [8, 128], strides = [1, 1]} : vector<8x384xf32> to vector<8x128xf32>
    %245 = vector.broadcast %4 : vector<1x128xf32> to vector<8x128xf32>
    %246 = arith.addf %244, %245 : vector<8x128xf32>
    %247 = arith.mulf %234, %246 : vector<8x128xf32>
    %248 = arith.addf %243, %247 : vector<8x128xf32>
    %249 = math.tanh %248 : vector<8x128xf32>
    %250 = arith.subf %214, %249 : vector<8x128xf32>
    %251 = arith.mulf %242, %250 : vector<8x128xf32>
    %252 = arith.addf %249, %251 : vector<8x128xf32>
    %253 = vector.broadcast %223 : i32 to vector<8x1xi32>
    %254 = arith.cmpi slt, %253, %5 : vector<8x1xi32>
    %255 = vector.shape_cast %254 : vector<8x1xi1> to vector<8x1xi1>
    %256 = vector.broadcast %255 : vector<8x1xi1> to vector<8x128xi1>
    %257 = arith.select %256, %252, %214 : vector<8x128xi1>, vector<8x128xf32>
    %cst_64 = arith.constant 0.000000e+00 : f32
    %258 = vector.shape_cast %254 : vector<8x1xi1> to vector<8x1xi1>
    %259 = vector.broadcast %258 : vector<8x1xi1> to vector<8x128xi1>
    %260 = vector.broadcast %cst_64 : f32 to vector<8x128xf32>
    %261 = arith.select %259, %252, %260 : vector<8x128xi1>, vector<8x128xf32>
    %c5_65 = arith.constant 5 : index
    %c0_66 = arith.constant 0 : index
    %c0_67 = arith.constant 0 : index
    %262 = vector.load %arg6[%c5_65, %c0_66, %c0_67] : memref<8x8x128xf32, #tpu.memory_space<vmem>>, vector<1x8x128xf32>
    %263 = vector.shape_cast %262 : vector<1x8x128xf32> to vector<8x128xf32>
    %264 = vector.shape_cast %261 : vector<8x128xf32> to vector<1x8x128xf32>
    tpu.vector_store %arg6[%c5_65, %c0_66, %c0_67], %264 {strides = array<i32>} : memref<8x8x128xf32, #tpu.memory_space<vmem>>, vector<1x8x128xf32>,
    %c8_i32_68 = arith.constant 8 : i32
    %265 = arith.muli %arg1, %c8_i32_68 : i32
    %c6_i32 = arith.constant 6 : i32
    %266 = arith.addi %265, %c6_i32 : i32
    %c6 = arith.constant 6 : index
    %c0_69 = arith.constant 0 : index
    %c0_70 = arith.constant 0 : index
    %267 = vector.load %arg3[%c6, %c0_69, %c0_70] : memref<8x8x384xf32, #tpu.memory_space<vmem>>, vector<1x8x384xf32>
    %268 = vector.shape_cast %267 : vector<1x8x384xf32> to vector<8x384xf32>
    %cst_71 = arith.constant dense<0.000000e+00> : vector<8x384xf32>
    %269 = tpu.matmul %257, %3, %cst_71 {dimension_numbers = #tpu.dot_dimension_numbers<[1], [0], [0], [1], [0, 0, 1, 1], [], []>} : vector<8x128xf32>, vector<128x384xf32>, vector<8x384xf32> -> vector<8x384xf32>
    %270 = vector.extract_strided_slice %268 {offsets = [0, 0], sizes = [8, 128], strides = [1, 1]} : vector<8x384xf32> to vector<8x128xf32>
    %271 = vector.extract_strided_slice %269 {offsets = [0, 0], sizes = [8, 128], strides = [1, 1]} : vector<8x384xf32> to vector<8x128xf32>
    %272 = arith.addf %270, %271 : vector<8x128xf32>
    %273 = arith.negf %272 : vector<8x128xf32>
    %274 = math.exp %273 : vector<8x128xf32>
    %cst_72 = arith.constant 1.000000e+00 : f32
    %275 = vector.broadcast %cst_72 : f32 to vector<8x128xf32>
    %276 = arith.addf %275, %274 : vector<8x128xf32>
    %277 = arith.divf %275, %276 : vector<8x128xf32>
    %278 = vector.extract_strided_slice %268 {offsets = [0, 128], sizes = [8, 128], strides = [1, 1]} : vector<8x384xf32> to vector<8x128xf32>
    %279 = vector.extract_strided_slice %269 {offsets = [0, 128], sizes = [8, 128], strides = [1, 1]} : vector<8x384xf32> to vector<8x128xf32>
    %280 = arith.addf %278, %279 : vector<8x128xf32>
    %281 = arith.negf %280 : vector<8x128xf32>
    %282 = math.exp %281 : vector<8x128xf32>
    %cst_73 = arith.constant 1.000000e+00 : f32
    %283 = vector.broadcast %cst_73 : f32 to vector<8x128xf32>
    %284 = arith.addf %283, %282 : vector<8x128xf32>
    %285 = arith.divf %283, %284 : vector<8x128xf32>
    %286 = vector.extract_strided_slice %268 {offsets = [0, 256], sizes = [8, 128], strides = [1, 1]} : vector<8x384xf32> to vector<8x128xf32>
    %287 = vector.extract_strided_slice %269 {offsets = [0, 256], sizes = [8, 128], strides = [1, 1]} : vector<8x384xf32> to vector<8x128xf32>
    %288 = vector.broadcast %4 : vector<1x128xf32> to vector<8x128xf32>
    %289 = arith.addf %287, %288 : vector<8x128xf32>
    %290 = arith.mulf %277, %289 : vector<8x128xf32>
    %291 = arith.addf %286, %290 : vector<8x128xf32>
    %292 = math.tanh %291 : vector<8x128xf32>
    %293 = arith.subf %257, %292 : vector<8x128xf32>
    %294 = arith.mulf %285, %293 : vector<8x128xf32>
    %295 = arith.addf %292, %294 : vector<8x128xf32>
    %296 = vector.broadcast %266 : i32 to vector<8x1xi32>
    %297 = arith.cmpi slt, %296, %5 : vector<8x1xi32>
    %298 = vector.shape_cast %297 : vector<8x1xi1> to vector<8x1xi1>
    %299 = vector.broadcast %298 : vector<8x1xi1> to vector<8x128xi1>
    %300 = arith.select %299, %295, %257 : vector<8x128xi1>, vector<8x128xf32>
    %cst_74 = arith.constant 0.000000e+00 : f32
    %301 = vector.shape_cast %297 : vector<8x1xi1> to vector<8x1xi1>
    %302 = vector.broadcast %301 : vector<8x1xi1> to vector<8x128xi1>
    %303 = vector.broadcast %cst_74 : f32 to vector<8x128xf32>
    %304 = arith.select %302, %295, %303 : vector<8x128xi1>, vector<8x128xf32>
    %c6_75 = arith.constant 6 : index
    %c0_76 = arith.constant 0 : index
    %c0_77 = arith.constant 0 : index
    %305 = vector.load %arg6[%c6_75, %c0_76, %c0_77] : memref<8x8x128xf32, #tpu.memory_space<vmem>>, vector<1x8x128xf32>
    %306 = vector.shape_cast %305 : vector<1x8x128xf32> to vector<8x128xf32>
    %307 = vector.shape_cast %304 : vector<8x128xf32> to vector<1x8x128xf32>
    tpu.vector_store %arg6[%c6_75, %c0_76, %c0_77], %307 {strides = array<i32>} : memref<8x8x128xf32, #tpu.memory_space<vmem>>, vector<1x8x128xf32>,
    %c8_i32_78 = arith.constant 8 : i32
    %308 = arith.muli %arg1, %c8_i32_78 : i32
    %c7_i32 = arith.constant 7 : i32
    %309 = arith.addi %308, %c7_i32 : i32
    %c7 = arith.constant 7 : index
    %c0_79 = arith.constant 0 : index
    %c0_80 = arith.constant 0 : index
    %310 = vector.load %arg3[%c7, %c0_79, %c0_80] : memref<8x8x384xf32, #tpu.memory_space<vmem>>, vector<1x8x384xf32>
    %311 = vector.shape_cast %310 : vector<1x8x384xf32> to vector<8x384xf32>
    %cst_81 = arith.constant dense<0.000000e+00> : vector<8x384xf32>
    %312 = tpu.matmul %300, %3, %cst_81 {dimension_numbers = #tpu.dot_dimension_numbers<[1], [0], [0], [1], [0, 0, 1, 1], [], []>} : vector<8x128xf32>, vector<128x384xf32>, vector<8x384xf32> -> vector<8x384xf32>
    %313 = vector.extract_strided_slice %311 {offsets = [0, 0], sizes = [8, 128], strides = [1, 1]} : vector<8x384xf32> to vector<8x128xf32>
    %314 = vector.extract_strided_slice %312 {offsets = [0, 0], sizes = [8, 128], strides = [1, 1]} : vector<8x384xf32> to vector<8x128xf32>
    %315 = arith.addf %313, %314 : vector<8x128xf32>
    %316 = arith.negf %315 : vector<8x128xf32>
    %317 = math.exp %316 : vector<8x128xf32>
    %cst_82 = arith.constant 1.000000e+00 : f32
    %318 = vector.broadcast %cst_82 : f32 to vector<8x128xf32>
    %319 = arith.addf %318, %317 : vector<8x128xf32>
    %320 = arith.divf %318, %319 : vector<8x128xf32>
    %321 = vector.extract_strided_slice %311 {offsets = [0, 128], sizes = [8, 128], strides = [1, 1]} : vector<8x384xf32> to vector<8x128xf32>
    %322 = vector.extract_strided_slice %312 {offsets = [0, 128], sizes = [8, 128], strides = [1, 1]} : vector<8x384xf32> to vector<8x128xf32>
    %323 = arith.addf %321, %322 : vector<8x128xf32>
    %324 = arith.negf %323 : vector<8x128xf32>
    %325 = math.exp %324 : vector<8x128xf32>
    %cst_83 = arith.constant 1.000000e+00 : f32
    %326 = vector.broadcast %cst_83 : f32 to vector<8x128xf32>
    %327 = arith.addf %326, %325 : vector<8x128xf32>
    %328 = arith.divf %326, %327 : vector<8x128xf32>
    %329 = vector.extract_strided_slice %311 {offsets = [0, 256], sizes = [8, 128], strides = [1, 1]} : vector<8x384xf32> to vector<8x128xf32>
    %330 = vector.extract_strided_slice %312 {offsets = [0, 256], sizes = [8, 128], strides = [1, 1]} : vector<8x384xf32> to vector<8x128xf32>
    %331 = vector.broadcast %4 : vector<1x128xf32> to vector<8x128xf32>
    %332 = arith.addf %330, %331 : vector<8x128xf32>
    %333 = arith.mulf %320, %332 : vector<8x128xf32>
    %334 = arith.addf %329, %333 : vector<8x128xf32>
    %335 = math.tanh %334 : vector<8x128xf32>
    %336 = arith.subf %300, %335 : vector<8x128xf32>
    %337 = arith.mulf %328, %336 : vector<8x128xf32>
    %338 = arith.addf %335, %337 : vector<8x128xf32>
    %339 = vector.broadcast %309 : i32 to vector<8x1xi32>
    %340 = arith.cmpi slt, %339, %5 : vector<8x1xi32>
    %341 = vector.shape_cast %340 : vector<8x1xi1> to vector<8x1xi1>
    %342 = vector.broadcast %341 : vector<8x1xi1> to vector<8x128xi1>
    %343 = arith.select %342, %338, %300 : vector<8x128xi1>, vector<8x128xf32>
    %cst_84 = arith.constant 0.000000e+00 : f32
    %344 = vector.shape_cast %340 : vector<8x1xi1> to vector<8x1xi1>
    %345 = vector.broadcast %344 : vector<8x1xi1> to vector<8x128xi1>
    %346 = vector.broadcast %cst_84 : f32 to vector<8x128xf32>
    %347 = arith.select %345, %338, %346 : vector<8x128xi1>, vector<8x128xf32>
    %c7_85 = arith.constant 7 : index
    %c0_86 = arith.constant 0 : index
    %c0_87 = arith.constant 0 : index
    %348 = vector.load %arg6[%c7_85, %c0_86, %c0_87] : memref<8x8x128xf32, #tpu.memory_space<vmem>>, vector<1x8x128xf32>
    %349 = vector.shape_cast %348 : vector<1x8x128xf32> to vector<8x128xf32>
    %350 = vector.shape_cast %347 : vector<8x128xf32> to vector<1x8x128xf32>
    tpu.vector_store %arg6[%c7_85, %c0_86, %c0_87], %350 {strides = array<i32>} : memref<8x8x128xf32, #tpu.memory_space<vmem>>, vector<1x8x128xf32>,
    %c0_88 = arith.constant 0 : index
    %c0_89 = arith.constant 0 : index
    %351 = vector.load %arg8[%c0_88, %c0_89] : memref<8x128xf32, #tpu.memory_space<vmem>>, vector<8x128xf32>
    tpu.vector_store %arg8[%c0_88, %c0_89], %343 {strides = array<i32>} : memref<8x128xf32, #tpu.memory_space<vmem>>, vector<8x128xf32>,
    %c0_i32_90 = arith.constant 0 : i32
    %352 = arith.cmpi eq, %arg1, %c0_i32_90 : i32
    %353 = arith.extui %352 : i1 to i32
    %c0_i32_91 = arith.constant 0 : i32
    %354 = arith.cmpi ne, %353, %c0_i32_91 : i32
    scf.if %354 {
      %c0_92 = arith.constant 0 : index
      %c0_93 = arith.constant 0 : index
      %355 = vector.load %arg7[%c0_92, %c0_93] : memref<8x128xf32, #tpu.memory_space<vmem>>, vector<8x128xf32>
      tpu.vector_store %arg7[%c0_92, %c0_93], %343 {strides = array<i32>} : memref<8x128xf32, #tpu.memory_space<vmem>>, vector<8x128xf32>,
    } else {
    }
    return
  }
  func.func @transform_0(%arg0: i32, %arg1: i32) -> (i32, i32) {
    %c0_i32 = arith.constant 0 : i32
    %c0_i32_0 = arith.constant 0 : i32
    return %arg0, %c0_i32 : i32, i32
  }
  func.func @transform_1(%arg0: i32, %arg1: i32) -> (i32, i32, i32) {
    %c0_i32 = arith.constant 0 : i32
    %c0_i32_0 = arith.constant 0 : i32
    return %arg1, %arg0, %c0_i32 : i32, i32, i32
  }
  func.func @transform_2(%arg0: i32, %arg1: i32) -> (i32, i32) {
    %c0_i32 = arith.constant 0 : i32
    %c0_i32_0 = arith.constant 0 : i32
    %c0_i32_1 = arith.constant 0 : i32
    return %c0_i32, %c0_i32_0 : i32, i32
  }
  func.func @transform_3(%arg0: i32, %arg1: i32) -> (i32, i32) {
    %c0_i32 = arith.constant 0 : i32
    %c0_i32_0 = arith.constant 0 : i32
    %c0_i32_1 = arith.constant 0 : i32
    return %c0_i32, %c0_i32_0 : i32, i32
  }
  func.func @transform_4(%arg0: i32, %arg1: i32) -> (i32, i32, i32) {
    %c0_i32 = arith.constant 0 : i32
    %c0_i32_0 = arith.constant 0 : i32
    return %arg1, %arg0, %c0_i32 : i32, i32, i32
  }
  func.func @transform_5(%arg0: i32, %arg1: i32) -> (i32, i32) {
    %c0_i32 = arith.constant 0 : i32
    %c0_i32_0 = arith.constant 0 : i32
    return %arg0, %c0_i32 : i32, i32
  }
}

</mosaic_0001>

<llo_original>
// kernel: gru_encoder_forward.1
$region0: #{gru_encoder_forward.1}
  #allocation0 [shape = 'u32[]', space=smem, size = 0x4, offset = 0x4, fixed_abs, tag = 'smem constant byte address 0x4 - core index']
  #allocation1 [shape = 'u32[144,128]{1,0:T(1,128)}', space=vmem, size = 0x12000, scoped, tag = 'internal scratch']
  #allocation2 [shape = 'f32[8,128]{1,0:T(8,128)}', space=vmem, size = 0x1000, scoped, tag = 'scratch operand']
  %s0 = inlined_call_operand.vmem [shape: s32[8,1], index: 0, kind: input, shape index: {}]
  %s1 = inlined_call_operand.vmem [shape: f32[8,8,384], index: 1, kind: input, shape index: {}]
  %s2 = inlined_call_operand.vmem [shape: f32[128,384], index: 2, kind: input, shape index: {}]
  %s3 = inlined_call_operand.vmem [shape: f32[1,128], index: 3, kind: input, shape index: {}]
  %s4 = inlined_call_operand.vmem [shape: f32[8,8,128], index: 4, kind: output, shape index: {0}]
  %s5 = inlined_call_operand.vmem [shape: f32[8,128], index: 5, kind: output, shape index: {1}]
  %6 = xla_tuple %s4, %s5
  %s7 = sld [smem:[#allocation0]]
  $region42: #{gru_encoder_forward.1} parent=0
    _
  %s9 = ssub.s32 1, %s7
  %s10 = scalar_select 0, %s9, %s7
  // Predicated region
  $region2: #{gru_encoder_forward.1} parent=0 // pred_check
    _
  $region3: #{gru_encoder_forward.1} parent=0 // pred_check_branch
    %12 = sbr.rel (0) target = $region5
  $region4: #{gru_encoder_forward.1} parent=0 // pred_region
    _
  $region5: #{gru_encoder_forward.1} parent=0 // pred_fallthru
    _
  // Predicated region
  $region6: #{gru_encoder_forward.1} parent=0 // pred_check
    _
  $region7: #{gru_encoder_forward.1} parent=0 // pred_check_branch
    %14 = sbr.rel (0) target = $region9
  $region8: #{gru_encoder_forward.1} parent=0 // pred_region
    _
  $region9: #{gru_encoder_forward.1} parent=0 // pred_fallthru
    _
  // Predicated region
  $region10: #{gru_encoder_forward.1} parent=0 // pred_check
    _
  $region11: #{gru_encoder_forward.1} parent=0 // pred_check_branch
    %16 = sbr.rel (0) target = $region13
  $region12: #{gru_encoder_forward.1} parent=0 // pred_region
    _
  $region13: #{gru_encoder_forward.1} parent=0 // pred_fallthru
    _
  // Predicated region
  $region14: #{gru_encoder_forward.1} parent=0 // pred_check
    _
  $region15: #{gru_encoder_forward.1} parent=0 // pred_check_branch
    %18 = sbr.rel (0) target = $region17
  $region16: #{gru_encoder_forward.1} parent=0 // pred_region
    _
  $region17: #{gru_encoder_forward.1} parent=0 // pred_fallthru
    _
  %p19 = scmp.eq.s32.totalorder 0, 0
  // Predicated region
  $region18: #{gru_encoder_forward.1} parent=0 // pred_check
    %p20 = pneg %p19
  $region19: #{gru_encoder_forward.1} parent=0 // pred_check_branch
    %22 = sbr.rel (%p20) target = $region21
  $region20: #{gru_encoder_forward.1} parent=0 // pred_region
    %23 = vst [vmem:[#allocation2] sm:$0xff] 0.0
  $region21: #{gru_encoder_forward.1} parent=0 // pred_fallthru
    _
  %v24 = vld [vmem:[%s2] sm:$0xff]
  %v25 = vld [vmem:[%s2 + $0x8] sm:$0xff]
  %v26 = vld [vmem:[%s2 + $0x10] sm:$0xff]
  %v27 = vld [vmem:[%s2 + $0x18] sm:$0xff]
  %v28 = vld [vmem:[%s2 + $0x20] sm:$0xff]
  %v29 = vld [vmem:[%s2 + $0x28] sm:$0xff]
  %v30 = vld [vmem:[%s2 + $0x30] sm:$0xff]
  %v31 = vld [vmem:[%s2 + $0x38] sm:$0xff]
  %v32 = vld [vmem:[%s2 + $0x40] sm:$0xff]
  %v33 = vld [vmem:[%s2 + $0x48] sm:$0xff]
  %v34 = vld [vmem:[%s2 + $0x50] sm:$0xff]
  %v35 = vld [vmem:[%s2 + $0x58] sm:$0xff]
  %v36 = vld [vmem:[%s2 + $0x60] sm:$0xff]
  %v37 = vld [vmem:[%s2 + $0x68] sm:$0xff]
  %v38 = vld [vmem:[%s2 + $0x70] sm:$0xff]
  %v39 = vld [vmem:[%s2 + $0x78] sm:$0xff]
  %v40 = vld [vmem:[%s2 + $0x80] sm:$0xff]
  %v41 = vld [vmem:[%s2 + $0x88] sm:$0xff]
  %v42 = vld [vmem:[%s2 + $0x90] sm:$0xff]
  %v43 = vld [vmem:[%s2 + $0x98] sm:$0xff]
  %v44 = vld [vmem:[%s2 + $0xa0] sm:$0xff]
  %v45 = vld [vmem:[%s2 + $0xa8] sm:$0xff]
  %v46 = vld [vmem:[%s2 + $0xb0] sm:$0xff]
  %v47 = vld [vmem:[%s2 + $0xb8] sm:$0xff]
  %v48 = vld [vmem:[%s2 + $0xc0] sm:$0xff]
  %v49 = vld [vmem:[%s2 + $0xc8] sm:$0xff]
  %v50 = vld [vmem:[%s2 + $0xd0] sm:$0xff]
  %v51 = vld [vmem:[%s2 + $0xd8] sm:$0xff]
  %v52 = vld [vmem:[%s2 + $0xe0] sm:$0xff]
  %v53 = vld [vmem:[%s2 + $0xe8] sm:$0xff]
  %v54 = vld [vmem:[%s2 + $0xf0] sm:$0xff]
  %v55 = vld [vmem:[%s2 + $0xf8] sm:$0xff]
  %v56 = vld [vmem:[%s2 + $0x100] sm:$0xff]
  %v57 = vld [vmem:[%s2 + $0x108] sm:$0xff]
  %v58 = vld [vmem:[%s2 + $0x110] sm:$0xff]
  %v59 = vld [vmem:[%s2 + $0x118] sm:$0xff]
  %v60 = vld [vmem:[%s2 + $0x120] sm:$0xff]
  %v61 = vld [vmem:[%s2 + $0x128] sm:$0xff]
  %v62 = vld [vmem:[%s2 + $0x130] sm:$0xff]
  %v63 = vld [vmem:[%s2 + $0x138] sm:$0xff]
  %v64 = vld [vmem:[%s2 + $0x140] sm:$0xff]
  %v65 = vld [vmem:[%s2 + $0x148] sm:$0xff]
  %v66 = vld [vmem:[%s2 + $0x150] sm:$0xff]
  %v67 = vld [vmem:[%s2 + $0x158] sm:$0xff]
  %v68 = vld [vmem:[%s2 + $0x160] sm:$0xff]
  %v69 = vld [vmem:[%s2 + $0x168] sm:$0xff]
  %v70 = vld [vmem:[%s2 + $0x170] sm:$0xff]
  %v71 = vld [vmem:[%s2 + $0x178] sm:$0xff]
  %v72 = vld [vmem:[%s3] sm:$0x1]
  %v73 = vld [vmem:[%s0] sm:$0xff]
  %v74 = vld [vmem:[#allocation2] sm:$0xff]
  %s75 = smul.u32 0, 8
  %v76 = vld [vmem:[%s1] sm:$0xff]
  %v77 = vld [vmem:[%s1 + $0x8] sm:$0xff]
  %v78 = vld [vmem:[%s1 + $0x10] sm:$0xff]
  %79 = vmatprep.subr.mxu0 %v25
  %80 = vmatpush1.msra.mxu0 %v24
  %81 = vmatprep.subr.mxu0 %v28
  %82 = vmatpush1.msra.mxu0 %v27
  %83 = vmatprep.subr.mxu0 %v31
  %84 = vmatpush1.msra.mxu0 %v30
  %85 = vmatprep.subr.mxu0 %v34
  %86 = vmatpush1.msra.mxu0 %v33
  %87 = vmatprep.subr.mxu0 %v37
  %88 = vmatpush1.msra.mxu0 %v36
  %89 = vmatprep.subr.mxu0 %v40
  %90 = vmatpush1.msra.mxu0 %v39
  %91 = vmatprep.subr.mxu0 %v43
  %92 = vmatpush1.msra.mxu0 %v42
  %93 = vmatprep.subr.mxu0 %v46
  %94 = vmatpush1.msra.mxu0 %v45
  %95 = vmatprep.subr.mxu0 %v49
  %96 = vmatpush1.msra.mxu0 %v48
  %97 = vmatprep.subr.mxu0 %v52
  %98 = vmatpush1.msra.mxu0 %v51
  %99 = vmatprep.subr.mxu0 %v55
  %100 = vmatpush1.msra.mxu0 %v54
  %101 = vmatprep.subr.mxu0 %v58
  %102 = vmatpush1.msra.mxu0 %v57
  %103 = vmatprep.subr.mxu0 %v61
  %104 = vmatpush1.msra.mxu0 %v60
  %105 = vmatprep.subr.mxu0 %v64
  %106 = vmatpush1.msra.mxu0 %v63
  %107 = vmatprep.subr.mxu0 %v67
  %108 = vmatpush1.msra.mxu0 %v66
  %109 = vmatprep.subr.mxu0 %v70
  %110 = vmatpush1.msra.mxu0 %v69
  %111 = vmatprep.subr.mxu0 0.0
  %112 = vmatpush1.msra.mxu0 0.0
  %113 = vmatprep.subr.mxu0 0.0
  %114 = vmatpush1.msra.mxu0 0.0
  %115 = vmatprep.subr.mxu0 0.0
  %116 = vmatpush1.msra.mxu0 0.0
  %117 = vmatprep.subr.mxu0 0.0
  %118 = vmatpush1.msra.mxu0 0.0
  %119 = vmatprep.subr.mxu0 0.0
  %120 = vmatpush1.msra.mxu0 0.0
  %121 = vmatprep.subr.mxu0 0.0
  %122 = vmatpush1.msra.mxu0 0.0
  %123 = vmatprep.subr.mxu0 0.0
  %124 = vmatpush1.msra.mxu0 0.0
  %125 = vmatprep.subr.mxu0 0.0
  %126 = vmatpush1.msra.mxu0 0.0
  %127 = vmatprep.subr.mxu0 0.0
  %128 = vmatpush1.msra.mxu0 0.0
  %129 = vmatprep.subr.mxu0 0.0
  %130 = vmatpush1.msra.mxu0 0.0
  %131 = vmatprep.subr.mxu0 0.0
  %132 = vmatpush1.msra.mxu0 0.0
  %133 = vmatprep.subr.mxu0 0.0
  %134 = vmatpush1.msra.mxu0 0.0
  %135 = vmatprep.subr.mxu0 0.0
  %136 = vmatpush1.msra.mxu0 0.0
  %137 = vmatprep.subr.mxu0 0.0
  %138 = vmatpush1.msra.mxu0 0.0
  %139 = vmatprep.subr.mxu0 0.0
  %140 = vmatpush1.msra.mxu0 0.0
  %141 = vmatprep.subr.mxu0 0.0
  %142 = vmatpush1.msra.mxu0 0.0
  %143 = vmatprep.mubr.f32.mxu0 0.0
  %144 = vmatmul.mubr.f32.gmra.mrb[0].mxu0 %v74
  %v145 = vpop.f32.mrb[0].mxu0
  %v146 = vadd.f32 0.0, %v145
  %v147 = vpop.f32.mrb[0].mxu0
  %v148 = vadd.f32 0.0, %v147
  %149 = vdwg.mxu0
  %150 = vmatprep.subr.mxu0 0.0
  %151 = vmatpush1.msra.mxu0 %v26
  %152 = vmatprep.subr.mxu0 0.0
  %153 = vmatpush1.msra.mxu0 %v29
  %154 = vmatprep.subr.mxu0 0.0
  %155 = vmatpush1.msra.mxu0 %v32
  %156 = vmatprep.subr.mxu0 0.0
  %157 = vmatpush1.msra.mxu0 %v35
  %158 = vmatprep.subr.mxu0 0.0
  %159 = vmatpush1.msra.mxu0 %v38
  %160 = vmatprep.subr.mxu0 0.0
  %161 = vmatpush1.msra.mxu0 %v41
  %162 = vmatprep.subr.mxu0 0.0
  %163 = vmatpush1.msra.mxu0 %v44
  %164 = vmatprep.subr.mxu0 0.0
  %165 = vmatpush1.msra.mxu0 %v47
  %166 = vmatprep.subr.mxu0 0.0
  %167 = vmatpush1.msra.mxu0 %v50
  %168 = vmatprep.subr.mxu0 0.0
  %169 = vmatpush1.msra.mxu0 %v53
  %170 = vmatprep.subr.mxu0 0.0
  %171 = vmatpush1.msra.mxu0 %v56
  %172 = vmatprep.subr.mxu0 0.0
  %173 = vmatpush1.msra.mxu0 %v59
  %174 = vmatprep.subr.mxu0 0.0
  %175 = vmatpush1.msra.mxu0 %v62
  %176 = vmatprep.subr.mxu0 0.0
  %177 = vmatpush1.msra.mxu0 %v65
  %178 = vmatprep.subr.mxu0 0.0
  %179 = vmatpush1.msra.mxu0 %v68
  %180 = vmatprep.subr.mxu0 0.0
  %181 = vmatpush1.msra.mxu0 %v71
  %182 = vmatprep.subr.mxu0 0.0
  %183 = vmatpush1.msra.mxu0 0.0
  %184 = vmatprep.subr.mxu0 0.0
  %185 = vmatpush1.msra.mxu0 0.0
  %186 = vmatprep.subr.mxu0 0.0
  %187 = vmatpush1.msra.mxu0 0.0
  %188 = vmatprep.subr.mxu0 0.0
  %189 = vmatpush1.msra.mxu0 0.0
  %190 = vmatprep.subr.mxu0 0.0
  %191 = vmatpush1.msra.mxu0 0.0
  %192 = vmatprep.subr.mxu0 0.0
  %193 = vmatpush1.msra.mxu0 0.0
  %194 = vmatprep.subr.mxu0 0.0
  %195 = vmatpush1.msra.mxu0 0.0
  %196 = vmatprep.subr.mxu0 0.0
  %197 = vmatpush1.msra.mxu0 0.0
  %198 = vmatprep.subr.mxu0 0.0
  %199 = vmatpush1.msra.mxu0 0.0
  %200 = vmatprep.subr.mxu0 0.0
  %201 = vmatpush1.msra.mxu0 0.0
  %202 = vmatprep.subr.mxu0 0.0
  %203 = vmatpush1.msra.mxu0 0.0
  %204 = vmatprep.subr.mxu0 0.0
  %205 = vmatpush1.msra.mxu0 0.0
  %206 = vmatprep.subr.mxu0 0.0
  %207 = vmatpush1.msra.mxu0 0.0
  %208 = vmatprep.subr.mxu0 0.0
  %209 = vmatpush1.msra.mxu0 0.0
  %210 = vmatprep.subr.mxu0 0.0
  %211 = vmatpush1.msra.mxu0 0.0
  %212 = vmatprep.subr.mxu0 0.0
  %213 = vmatpush1.msra.mxu0 0.0
  %214 = vmatprep.mubr.f32.mxu0 0.0
  %215 = vmatmul.mubr.f32.gmra.mrb[0].mxu0 %v74
  %v216 = vpop.f32.mrb[0].mxu0
  %v217 = vadd.f32 0.0, %v216
  %v218 = vpop.f32.mrb[0].mxu0
  %219 = vdwg.mxu0
  %v220 = vadd.f32 %v76, %v146
  %v221 = vxor.u32 %v220, 2147483648
  %v222 = vmul.f32 %v221, 1.442695
  %v223 = vpow.pop %v222
  %v224 = vadd.f32 %v223, 1.0
  %v225 = vrcp.pop %v224
  %v226 = vmul.f32 1.0, %v225
  %v227 = vadd.f32 %v77, %v148
  %v228 = vxor.u32 %v227, 2147483648
  %v229 = vmul.f32 %v228, 1.442695
  %v230 = vpow.pop %v229
  %v231 = vadd.f32 %v230, 1.0
  %v232 = vrcp.pop %v231
  %v233 = vmul.f32 1.0, %v232
  %v235 = vlaneseq
  %v236 = vshrl.u32 %v235, 7
  %v237 = vsub.s32 0, %v236
  %v238 = vrot.slane %v72, %v237
  %v240 = vadd.f32 %v217, %v238
  %v241 = vmul.f32 %v226, %v240
  %v242 = vadd.f32 %v78, %v241
  %v243 = vtanh.pop %v242
  %v244 = vsub.f32 %v74, %v243
  %v245 = vmul.f32 %v233, %v244
  %v246 = vadd.f32 %v243, %v245
  %v247 = vstv %s75
  %vm248 = vcmp.lt.s32.totalorder %v247, %v73
  %v249 = vsel %vm248, 1, 0
  %250 = vset.pattern.permute.xlu0 0
  %251 = vperm.xlu0 %250, %v249
  %v252 = vpop.permute.xlu0 %251
  %vm253 = vcmp.eq.s32.totalorder %v252, 1
  %v254 = vsel %vm253, %v246, %v74
  %v255 = vsel %vm253, %v246, 0.0
  %256 = vst [vmem:[%s4] sm:$0xff] %v255
  %s257 = sadd.s32 %s75, 1
  %s258 = scalar_lea.vmem %s1, 24
  %v259 = vld [vmem:[%s258] sm:$0xff]
  %v260 = vld [vmem:[%s258 + $0x8] sm:$0xff]
  %v261 = vld [vmem:[%s258 + $0x10] sm:$0xff]
  %262 = vmatprep.subr.mxu0 %v25
  %263 = vmatpush1.msra.mxu0 %v24
  %264 = vmatprep.subr.mxu0 %v28
  %265 = vmatpush1.msra.mxu0 %v27
  %266 = vmatprep.subr.mxu0 %v31
  %267 = vmatpush1.msra.mxu0 %v30
  %268 = vmatprep.subr.mxu0 %v34
  %269 = vmatpush1.msra.mxu0 %v33
  %270 = vmatprep.subr.mxu0 %v37
  %271 = vmatpush1.msra.mxu0 %v36
  %272 = vmatprep.subr.mxu0 %v40
  %273 = vmatpush1.msra.mxu0 %v39
  %274 = vmatprep.subr.mxu0 %v43
  %275 = vmatpush1.msra.mxu0 %v42
  %276 = vmatprep.subr.mxu0 %v46
  %277 = vmatpush1.msra.mxu0 %v45
  %278 = vmatprep.subr.mxu0 %v49
  %279 = vmatpush1.msra.mxu0 %v48
  %280 = vmatprep.subr.mxu0 %v52
  %281 = vmatpush1.msra.mxu0 %v51
  %282 = vmatprep.subr.mxu0 %v55
  %283 = vmatpush1.msra.mxu0 %v54
  %284 = vmatprep.subr.mxu0 %v58
  %285 = vmatpush1.msra.mxu0 %v57
  %286 = vmatprep.subr.mxu0 %v61
  %287 = vmatpush1.msra.mxu0 %v60
  %288 = vmatprep.subr.mxu0 %v64
  %289 = vmatpush1.msra.mxu0 %v63
  %290 = vmatprep.subr.mxu0 %v67
  %291 = vmatpush1.msra.mxu0 %v66
  %292 = vmatprep.subr.mxu0 %v70
  %293 = vmatpush1.msra.mxu0 %v69
  %294 = vmatprep.subr.mxu0 0.0
  %295 = vmatpush1.msra.mxu0 0.0
  %296 = vmatprep.subr.mxu0 0.0
  %297 = vmatpush1.msra.mxu0 0.0
  %298 = vmatprep.subr.mxu0 0.0
  %299 = vmatpush1.msra.mxu0 0.0
  %300 = vmatprep.subr.mxu0 0.0
  %301 = vmatpush1.msra.mxu0 0.0
  %302 = vmatprep.subr.mxu0 0.0
  %303 = vmatpush1.msra.mxu0 0.0
  %304 = vmatprep.subr.mxu0 0.0
  %305 = vmatpush1.msra.mxu0 0.0
  %306 = vmatprep.subr.mxu0 0.0
  %307 = vmatpush1.msra.mxu0 0.0
  %308 = vmatprep.subr.mxu0 0.0
  %309 = vmatpush1.msra.mxu0 0.0
  %310 = vmatprep.subr.mxu0 0.0
  %311 = vmatpush1.msra.mxu0 0.0
  %312 = vmatprep.subr.mxu0 0.0
  %313 = vmatpush1.msra.mxu0 0.0
  %314 = vmatprep.subr.mxu0 0.0
  %315 = vmatpush1.msra.mxu0 0.0
  %316 = vmatprep.subr.mxu0 0.0
  %317 = vmatpush1.msra.mxu0 0.0
  %318 = vmatprep.subr.mxu0 0.0
  %319 = vmatpush1.msra.mxu0 0.0
  %320 = vmatprep.subr.mxu0 0.0
  %321 = vmatpush1.msra.mxu0 0.0
  %322 = vmatprep.subr.mxu0 0.0
  %323 = vmatpush1.msra.mxu0 0.0
  %324 = vmatprep.subr.mxu0 0.0
  %325 = vmatpush1.msra.mxu0 0.0
  %326 = vmatprep.mubr.f32.mxu0 0.0
  %327 = vmatmul.mubr.f32.gmra.mrb[0].mxu0 %v254
  %v328 = vpop.f32.mrb[0].mxu0
  %v329 = vadd.f32 0.0, %v328
  %v330 = vpop.f32.mrb[0].mxu0
  %v331 = vadd.f32 0.0, %v330
  %332 = vdwg.mxu0
  %333 = vmatprep.subr.mxu0 0.0
  %334 = vmatpush1.msra.mxu0 %v26
  %335 = vmatprep.subr.mxu0 0.0
  %336 = vmatpush1.msra.mxu0 %v29
  %337 = vmatprep.subr.mxu0 0.0
  %338 = vmatpush1.msra.mxu0 %v32
  %339 = vmatprep.subr.mxu0 0.0
  %340 = vmatpush1.msra.mxu0 %v35
  %341 = vmatprep.subr.mxu0 0.0
  %342 = vmatpush1.msra.mxu0 %v38
  %343 = vmatprep.subr.mxu0 0.0
  %344 = vmatpush1.msra.mxu0 %v41
  %345 = vmatprep.subr.mxu0 0.0
  %346 = vmatpush1.msra.mxu0 %v44
  %347 = vmatprep.subr.mxu0 0.0
  %348 = vmatpush1.msra.mxu0 %v47
  %349 = vmatprep.subr.mxu0 0.0
  %350 = vmatpush1.msra.mxu0 %v50
  %351 = vmatprep.subr.mxu0 0.0
  %352 = vmatpush1.msra.mxu0 %v53
  %353 = vmatprep.subr.mxu0 0.0
  %354 = vmatpush1.msra.mxu0 %v56
  %355 = vmatprep.subr.mxu0 0.0
  %356 = vmatpush1.msra.mxu0 %v59
  %357 = vmatprep.subr.mxu0 0.0
  %358 = vmatpush1.msra.mxu0 %v62
  %359 = vmatprep.subr.mxu0 0.0
  %360 = vmatpush1.msra.mxu0 %v65
  %361 = vmatprep.subr.mxu0 0.0
  %362 = vmatpush1.msra.mxu0 %v68
  %363 = vmatprep.subr.mxu0 0.0
  %364 = vmatpush1.msra.mxu0 %v71
  %365 = vmatprep.subr.mxu0 0.0
  %366 = vmatpush1.msra.mxu0 0.0
  %367 = vmatprep.subr.mxu0 0.0
  %368 = vmatpush1.msra.mxu0 0.0
  %369 = vmatprep.subr.mxu0 0.0
  %370 = vmatpush1.msra.mxu0 0.0
  %371 = vmatprep.subr.mxu0 0.0
  %372 = vmatpush1.msra.mxu0 0.0
  %373 = vmatprep.subr.mxu0 0.0
  %374 = vmatpush1.msra.mxu0 0.0
  %375 = vmatprep.subr.mxu0 0.0
  %376 = vmatpush1.msra.mxu0 0.0
  %377 = vmatprep.subr.mxu0 0.0
  %378 = vmatpush1.msra.mxu0 0.0
  %379 = vmatprep.subr.mxu0 0.0
  %380 = vmatpush1.msra.mxu0 0.0
  %381 = vmatprep.subr.mxu0 0.0
  %382 = vmatpush1.msra.mxu0 0.0
  %383 = vmatprep.subr.mxu0 0.0
  %384 = vmatpush1.msra.mxu0 0.0
  %385 = vmatprep.subr.mxu0 0.0
  %386 = vmatpush1.msra.mxu0 0.0
  %387 = vmatprep.subr.mxu0 0.0
  %388 = vmatpush1.msra.mxu0 0.0
  %389 = vmatprep.subr.mxu0 0.0
  %390 = vmatpush1.msra.mxu0 0.0
  %391 = vmatprep.subr.mxu0 0.0
  %392 = vmatpush1.msra.mxu0 0.0
  %393 = vmatprep.subr.mxu0 0.0
  %394 = vmatpush1.msra.mxu0 0.0
  %395 = vmatprep.subr.mxu0 0.0
  %396 = vmatpush1.msra.mxu0 0.0
  %397 = vmatprep.mubr.f32.mxu0 0.0
  %398 = vmatmul.mubr.f32.gmra.mrb[0].mxu0 %v254
  %v399 = vpop.f32.mrb[0].mxu0
  %v400 = vadd.f32 0.0, %v399
  %v401 = vpop.f32.mrb[0].mxu0
  %402 = vdwg.mxu0
  %v403 = vadd.f32 %v259, %v329
  %v404 = vxor.u32 %v403, 2147483648
  %v405 = vmul.f32 %v404, 1.442695
  %v406 = vpow.pop %v405
  %v407 = vadd.f32 %v406, 1.0
  %v408 = vrcp.pop %v407
  %v409 = vmul.f32 1.0, %v408
  %v410 = vadd.f32 %v260, %v331
  %v411 = vxor.u32 %v410, 2147483648
  %v412 = vmul.f32 %v411, 1.442695
  %v413 = vpow.pop %v412
  %v414 = vadd.f32 %v413, 1.0
  %v415 = vrcp.pop %v414
  %v416 = vmul.f32 1.0, %v415
  %v417 = vadd.f32 %v400, %v238
  %v418 = vmul.f32 %v409, %v417
  %v419 = vadd.f32 %v261, %v418
  %v420 = vtanh.pop %v419
  %v421 = vsub.f32 %v254, %v420
  %v422 = vmul.f32 %v416, %v421
  %v423 = vadd.f32 %v420, %v422
  %v424 = vstv %s257
  %vm425 = vcmp.lt.s32.totalorder %v424, %v73
  %v426 = vsel %vm425, 1, 0
  %427 = vset.pattern.permute.xlu0 0
  %428 = vperm.xlu0 %427, %v426
  %v429 = vpop.permute.xlu0 %428
  %vm430 = vcmp.eq.s32.totalorder %v429, 1
  %v431 = vsel %vm430, %v423, %v254
  %v432 = vsel %vm430, %v423, 0.0
  %s433 = scalar_lea.vmem %s4, 8
  %434 = vst [vmem:[%s433] sm:$0xff] %v432
  %s435 = sadd.s32 %s75, 2
  %s436 = scalar_lea.vmem %s1, 48
  %v437 = vld [vmem:[%s436] sm:$0xff]
  %v438 = vld [vmem:[%s436 + $0x8] sm:$0xff]
  %v439 = vld [vmem:[%s436 + $0x10] sm:$0xff]
  %440 = vmatprep.subr.mxu0 %v25
  %441 = vmatpush1.msra.mxu0 %v24
  %442 = vmatprep.subr.mxu0 %v28
  %443 = vmatpush1.msra.mxu0 %v27
  %444 = vmatprep.subr.mxu0 %v31
  %445 = vmatpush1.msra.mxu0 %v30
  %446 = vmatprep.subr.mxu0 %v34
  %447 = vmatpush1.msra.mxu0 %v33
  %448 = vmatprep.subr.mxu0 %v37
  %449 = vmatpush1.msra.mxu0 %v36
  %450 = vmatprep.subr.mxu0 %v40
  %451 = vmatpush1.msra.mxu0 %v39
  %452 = vmatprep.subr.mxu0 %v43
  %453 = vmatpush1.msra.mxu0 %v42
  %454 = vmatprep.subr.mxu0 %v46
  %455 = vmatpush1.msra.mxu0 %v45
  %456 = vmatprep.subr.mxu0 %v49
  %457 = vmatpush1.msra.mxu0 %v48
  %458 = vmatprep.subr.mxu0 %v52
  %459 = vmatpush1.msra.mxu0 %v51
  %460 = vmatprep.subr.mxu0 %v55
  %461 = vmatpush1.msra.mxu0 %v54
  %462 = vmatprep.subr.mxu0 %v58
  %463 = vmatpush1.msra.mxu0 %v57
  %464 = vmatprep.subr.mxu0 %v61
  %465 = vmatpush1.msra.mxu0 %v60
  %466 = vmatprep.subr.mxu0 %v64
  %467 = vmatpush1.msra.mxu0 %v63
  %468 = vmatprep.subr.mxu0 %v67
  %469 = vmatpush1.msra.mxu0 %v66
  %470 = vmatprep.subr.mxu0 %v70
  %471 = vmatpush1.msra.mxu0 %v69
  %472 = vmatprep.subr.mxu0 0.0
  %473 = vmatpush1.msra.mxu0 0.0
  %474 = vmatprep.subr.mxu0 0.0
  %475 = vmatpush1.msra.mxu0 0.0
  %476 = vmatprep.subr.mxu0 0.0
  %477 = vmatpush1.msra.mxu0 0.0
  %478 = vmatprep.subr.mxu0 0.0
  %479 = vmatpush1.msra.mxu0 0.0
  %480 = vmatprep.subr.mxu0 0.0
  %481 = vmatpush1.msra.mxu0 0.0
  %482 = vmatprep.subr.mxu0 0.0
  %483 = vmatpush1.msra.mxu0 0.0
  %484 = vmatprep.subr.mxu0 0.0
  %485 = vmatpush1.msra.mxu0 0.0
  %486 = vmatprep.subr.mxu0 0.0
  %487 = vmatpush1.msra.mxu0 0.0
  %488 = vmatprep.subr.mxu0 0.0
  %489 = vmatpush1.msra.mxu0 0.0
  %490 = vmatprep.subr.mxu0 0.0
  %491 = vmatpush1.msra.mxu0 0.0
  %492 = vmatprep.subr.mxu0 0.0
  %493 = vmatpush1.msra.mxu0 0.0
  %494 = vmatprep.subr.mxu0 0.0
  %495 = vmatpush1.msra.mxu0 0.0
  %496 = vmatprep.subr.mxu0 0.0
  %497 = vmatpush1.msra.mxu0 0.0
  %498 = vmatprep.subr.mxu0 0.0
  %499 = vmatpush1.msra.mxu0 0.0
  %500 = vmatprep.subr.mxu0 0.0
  %501 = vmatpush1.msra.mxu0 0.0
  %502 = vmatprep.subr.mxu0 0.0
  %503 = vmatpush1.msra.mxu0 0.0
  %504 = vmatprep.mubr.f32.mxu0 0.0
  %505 = vmatmul.mubr.f32.gmra.mrb[0].mxu0 %v431
  %v506 = vpop.f32.mrb[0].mxu0
  %v507 = vadd.f32 0.0, %v506
  %v508 = vpop.f32.mrb[0].mxu0
  %v509 = vadd.f32 0.0, %v508
  %510 = vdwg.mxu0
  %511 = vmatprep.subr.mxu0 0.0
  %512 = vmatpush1.msra.mxu0 %v26
  %513 = vmatprep.subr.mxu0 0.0
  %514 = vmatpush1.msra.mxu0 %v29
  %515 = vmatprep.subr.mxu0 0.0
  %516 = vmatpush1.msra.mxu0 %v32
  %517 = vmatprep.subr.mxu0 0.0
  %518 = vmatpush1.msra.mxu0 %v35
  %519 = vmatprep.subr.mxu0 0.0
  %520 = vmatpush1.msra.mxu0 %v38
  %521 = vmatprep.subr.mxu0 0.0
  %522 = vmatpush1.msra.mxu0 %v41
  %523 = vmatprep.subr.mxu0 0.0
  %524 = vmatpush1.msra.mxu0 %v44
  %525 = vmatprep.subr.mxu0 0.0
  %526 = vmatpush1.msra.mxu0 %v47
  %527 = vmatprep.subr.mxu0 0.0
  %528 = vmatpush1.msra.mxu0 %v50
  %529 = vmatprep.subr.mxu0 0.0
  %530 = vmatpush1.msra.mxu0 %v53
  %531 = vmatprep.subr.mxu0 0.0
  %532 = vmatpush1.msra.mxu0 %v56
  %533 = vmatprep.subr.mxu0 0.0
  %534 = vmatpush1.msra.mxu0 %v59
  %535 = vmatprep.subr.mxu0 0.0
  %536 = vmatpush1.msra.mxu0 %v62
  %537 = vmatprep.subr.mxu0 0.0
  %538 = vmatpush1.msra.mxu0 %v65
  %539 = vmatprep.subr.mxu0 0.0
  %540 = vmatpush1.msra.mxu0 %v68
  %541 = vmatprep.subr.mxu0 0.0
  %542 = vmatpush1.msra.mxu0 %v71
  %543 = vmatprep.subr.mxu0 0.0
  %544 = vmatpush1.msra.mxu0 0.0
  %545 = vmatprep.subr.mxu0 0.0
  %546 = vmatpush1.msra.mxu0 0.0
  %547 = vmatprep.subr.mxu0 0.0
  %548 = vmatpush1.msra.mxu0 0.0
  %549 = vmatprep.subr.mxu0 0.0
  %550 = vmatpush1.msra.mxu0 0.0
  %551 = vmatprep.subr.mxu0 0.0
  %552 = vmatpush1.msra.mxu0 0.0
  %553 = vmatprep.subr.mxu0 0.0
  %554 = vmatpush1.msra.mxu0 0.0
  %555 = vmatprep.subr.mxu0 0.0
  %556 = vmatpush1.msra.mxu0 0.0
  %557 = vmatprep.subr.mxu0 0.0
  %558 = vmatpush1.msra.mxu0 0.0
  %559 = vmatprep.subr.mxu0 0.0
  %560 = vmatpush1.msra.mxu0 0.0
  %561 = vmatprep.subr.mxu0 0.0
  %562 = vmatpush1.msra.mxu0 0.0
  %563 = vmatprep.subr.mxu0 0.0
  %564 = vmatpush1.msra.mxu0 0.0
  %565 = vmatprep.subr.mxu0 0.0
  %566 = vmatpush1.msra.mxu0 0.0
  %567 = vmatprep.subr.mxu0 0.0
  %568 = vmatpush1.msra.mxu0 0.0
  %569 = vmatprep.subr.mxu0 0.0
  %570 = vmatpush1.msra.mxu0 0.0
  %571 = vmatprep.subr.mxu0 0.0
  %572 = vmatpush1.msra.mxu0 0.0
  %573 = vmatprep.subr.mxu0 0.0
  %574 = vmatpush1.msra.mxu0 0.0
  %575 = vmatprep.mubr.f32.mxu0 0.0
  %576 = vmatmul.mubr.f32.gmra.mrb[0].mxu0 %v431
  %v577 = vpop.f32.mrb[0].mxu0
  %v578 = vadd.f32 0.0, %v577
  %v579 = vpop.f32.mrb[0].mxu0
  %580 = vdwg.mxu0
  %v581 = vadd.f32 %v437, %v507
  %v582 = vxor.u32 %v581, 2147483648
  %v583 = vmul.f32 %v582, 1.442695
  %v584 = vpow.pop %v583
  %v585 = vadd.f32 %v584, 1.0
  %v586 = vrcp.pop %v585
  %v587 = vmul.f32 1.0, %v586
  %v588 = vadd.f32 %v438, %v509
  %v589 = vxor.u32 %v588, 2147483648
  %v590 = vmul.f32 %v589, 1.442695
  %v591 = vpow.pop %v590
  %v592 = vadd.f32 %v591, 1.0
  %v593 = vrcp.pop %v592
  %v594 = vmul.f32 1.0, %v593
  %v595 = vadd.f32 %v578, %v238
  %v596 = vmul.f32 %v587, %v595
  %v597 = vadd.f32 %v439, %v596
  %v598 = vtanh.pop %v597
  %v599 = vsub.f32 %v431, %v598
  %v600 = vmul.f32 %v594, %v599
  %v601 = vadd.f32 %v598, %v600
  %v602 = vstv %s435
  %vm603 = vcmp.lt.s32.totalorder %v602, %v73
  %v604 = vsel %vm603, 1, 0
  %605 = vset.pattern.permute.xlu0 0
  %606 = vperm.xlu0 %605, %v604
  %v607 = vpop.permute.xlu0 %606
  %vm608 = vcmp.eq.s32.totalorder %v607, 1
  %v609 = vsel %vm608, %v601, %v431
  %v610 = vsel %vm608, %v601, 0.0
  %s611 = scalar_lea.vmem %s4, 16
  %612 = vst [vmem:[%s611] sm:$0xff] %v610
  %s613 = sadd.s32 %s75, 3
  %s614 = scalar_lea.vmem %s1, 72
  %v615 = vld [vmem:[%s614] sm:$0xff]
  %v616 = vld [vmem:[%s614 + $0x8] sm:$0xff]
  %v617 = vld [vmem:[%s614 + $0x10] sm:$0xff]
  %618 = vmatprep.subr.mxu0 %v25
  %619 = vmatpush1.msra.mxu0 %v24
  %620 = vmatprep.subr.mxu0 %v28
  %621 = vmatpush1.msra.mxu0 %v27
  %622 = vmatprep.subr.mxu0 %v31
  %623 = vmatpush1.msra.mxu0 %v30
  %624 = vmatprep.subr.mxu0 %v34
  %625 = vmatpush1.msra.mxu0 %v33
  %626 = vmatprep.subr.mxu0 %v37
  %627 = vmatpush1.msra.mxu0 %v36
  %628 = vmatprep.subr.mxu0 %v40
  %629 = vmatpush1.msra.mxu0 %v39
  %630 = vmatprep.subr.mxu0 %v43
  %631 = vmatpush1.msra.mxu0 %v42
  %632 = vmatprep.subr.mxu0 %v46
  %633 = vmatpush1.msra.mxu0 %v45
  %634 = vmatprep.subr.mxu0 %v49
  %635 = vmatpush1.msra.mxu0 %v48
  %636 = vmatprep.subr.mxu0 %v52
  %637 = vmatpush1.msra.mxu0 %v51
  %638 = vmatprep.subr.mxu0 %v55
  %639 = vmatpush1.msra.mxu0 %v54
  %640 = vmatprep.subr.mxu0 %v58
  %641 = vmatpush1.msra.mxu0 %v57
  %642 = vmatprep.subr.mxu0 %v61
  %643 = vmatpush1.msra.mxu0 %v60
  %644 = vmatprep.subr.mxu0 %v64
  %645 = vmatpush1.msra.mxu0 %v63
  %646 = vmatprep.subr.mxu0 %v67
  %647 = vmatpush1.msra.mxu0 %v66
  %648 = vmatprep.subr.mxu0 %v70
  %649 = vmatpush1.msra.mxu0 %v69
  %650 = vmatprep.subr.mxu0 0.0
  %651 = vmatpush1.msra.mxu0 0.0
  %652 = vmatprep.subr.mxu0 0.0
  %653 = vmatpush1.msra.mxu0 0.0
  %654 = vmatprep.subr.mxu0 0.0
  %655 = vmatpush1.msra.mxu0 0.0
  %656 = vmatprep.subr.mxu0 0.0
  %657 = vmatpush1.msra.mxu0 0.0
  %658 = vmatprep.subr.mxu0 0.0
  %659 = vmatpush1.msra.mxu0 0.0
  %660 = vmatprep.subr.mxu0 0.0
  %661 = vmatpush1.msra.mxu0 0.0
  %662 = vmatprep.subr.mxu0 0.0
  %663 = vmatpush1.msra.mxu0 0.0
  %664 = vmatprep.subr.mxu0 0.0
  %665 = vmatpush1.msra.mxu0 0.0
  %666 = vmatprep.subr.mxu0 0.0
  %667 = vmatpush1.msra.mxu0 0.0
  %668 = vmatprep.subr.mxu0 0.0
  %669 = vmatpush1.msra.mxu0 0.0
  %670 = vmatprep.subr.mxu0 0.0
  %671 = vmatpush1.msra.mxu0 0.0
  %672 = vmatprep.subr.mxu0 0.0
  %673 = vmatpush1.msra.mxu0 0.0
  %674 = vmatprep.subr.mxu0 0.0
  %675 = vmatpush1.msra.mxu0 0.0
  %676 = vmatprep.subr.mxu0 0.0
  %677 = vmatpush1.msra.mxu0 0.0
  %678 = vmatprep.subr.mxu0 0.0
  %679 = vmatpush1.msra.mxu0 0.0
  %680 = vmatprep.subr.mxu0 0.0
  %681 = vmatpush1.msra.mxu0 0.0
  %682 = vmatprep.mubr.f32.mxu0 0.0
  %683 = vmatmul.mubr.f32.gmra.mrb[0].mxu0 %v609
  %v684 = vpop.f32.mrb[0].mxu0
  %v685 = vadd.f32 0.0, %v684
  %v686 = vpop.f32.mrb[0].mxu0
  %v687 = vadd.f32 0.0, %v686
  %688 = vdwg.mxu0
  %689 = vmatprep.subr.mxu0 0.0
  %690 = vmatpush1.msra.mxu0 %v26
  %691 = vmatprep.subr.mxu0 0.0
  %692 = vmatpush1.msra.mxu0 %v29
  %693 = vmatprep.subr.mxu0 0.0
  %694 = vmatpush1.msra.mxu0 %v32
  %695 = vmatprep.subr.mxu0 0.0
  %696 = vmatpush1.msra.mxu0 %v35
  %697 = vmatprep.subr.mxu0 0.0
  %698 = vmatpush1.msra.mxu0 %v38
  %699 = vmatprep.subr.mxu0 0.0
  %700 = vmatpush1.msra.mxu0 %v41
  %701 = vmatprep.subr.mxu0 0.0
  %702 = vmatpush1.msra.mxu0 %v44
  %703 = vmatprep.subr.mxu0 0.0
  %704 = vmatpush1.msra.mxu0 %v47
  %705 = vmatprep.subr.mxu0 0.0
  %706 = vmatpush1.msra.mxu0 %v50
  %707 = vmatprep.subr.mxu0 0.0
  %708 = vmatpush1.msra.mxu0 %v53
  %709 = vmatprep.subr.mxu0 0.0
  %710 = vmatpush1.msra.mxu0 %v56
  %711 = vmatprep.subr.mxu0 0.0
  %712 = vmatpush1.msra.mxu0 %v59
  %713 = vmatprep.subr.mxu0 0.0
  %714 = vmatpush1.msra.mxu0 %v62
  %715 = vmatprep.subr.mxu0 0.0
  %716 = vmatpush1.msra.mxu0 %v65
  %717 = vmatprep.subr.mxu0 0.0
  %718 = vmatpush1.msra.mxu0 %v68
  %719 = vmatprep.subr.mxu0 0.0
  %720 = vmatpush1.msra.mxu0 %v71
  %721 = vmatprep.subr.mxu0 0.0
  %722 = vmatpush1.msra.mxu0 0.0
  %723 = vmatprep.subr.mxu0 0.0
  %724 = vmatpush1.msra.mxu0 0.0
  %725 = vmatprep.subr.mxu0 0.0
  %726 = vmatpush1.msra.mxu0 0.0
  %727 = vmatprep.subr.mxu0 0.0
  %728 = vmatpush1.msra.mxu0 0.0
  %729 = vmatprep.subr.mxu0 0.0
  %730 = vmatpush1.msra.mxu0 0.0
  %731 = vmatprep.subr.mxu0 0.0
  %732 = vmatpush1.msra.mxu0 0.0
  %733 = vmatprep.subr.mxu0 0.0
  %734 = vmatpush1.msra.mxu0 0.0
  %735 = vmatprep.subr.mxu0 0.0
  %736 = vmatpush1.msra.mxu0 0.0
  %737 = vmatprep.subr.mxu0 0.0
  %738 = vmatpush1.msra.mxu0 0.0
  %739 = vmatprep.subr.mxu0 0.0
  %740 = vmatpush1.msra.mxu0 0.0
  %741 = vmatprep.subr.mxu0 0.0
  %742 = vmatpush1.msra.mxu0 0.0
  %743 = vmatprep.subr.mxu0 0.0
  %744 = vmatpush1.msra.mxu0 0.0
  %745 = vmatprep.subr.mxu0 0.0
  %746 = vmatpush1.msra.mxu0 0.0
  %747 = vmatprep.subr.mxu0 0.0
  %748 = vmatpush1.msra.mxu0 0.0
  %749 = vmatprep.subr.mxu0 0.0
  %750 = vmatpush1.msra.mxu0 0.0
  %751 = vmatprep.subr.mxu0 0.0
  %752 = vmatpush1.msra.mxu0 0.0
  %753 = vmatprep.mubr.f32.mxu0 0.0
  %754 = vmatmul.mubr.f32.gmra.mrb[0].mxu0 %v609
  %v755 = vpop.f32.mrb[0].mxu0
  %v756 = vadd.f32 0.0, %v755
  %v757 = vpop.f32.mrb[0].mxu0
  %758 = vdwg.mxu0
  %v759 = vadd.f32 %v615, %v685
  %v760 = vxor.u32 %v759, 2147483648
  %v761 = vmul.f32 %v760, 1.442695
  %v762 = vpow.pop %v761
  %v763 = vadd.f32 %v762, 1.0
  %v764 = vrcp.pop %v763
  %v765 = vmul.f32 1.0, %v764
  %v766 = vadd.f32 %v616, %v687
  %v767 = vxor.u32 %v766, 2147483648
  %v768 = vmul.f32 %v767, 1.442695
  %v769 = vpow.pop %v768
  %v770 = vadd.f32 %v769, 1.0
  %v771 = vrcp.pop %v770
  %v772 = vmul.f32 1.0, %v771
  %v773 = vadd.f32 %v756, %v238
  %v774 = vmul.f32 %v765, %v773
  %v775 = vadd.f32 %v617, %v774
  %v776 = vtanh.pop %v775
  %v777 = vsub.f32 %v609, %v776
  %v778 = vmul.f32 %v772, %v777
  %v779 = vadd.f32 %v776, %v778
  %v780 = vstv %s613
  %vm781 = vcmp.lt.s32.totalorder %v780, %v73
  %v782 = vsel %vm781, 1, 0
  %783 = vset.pattern.permute.xlu0 0
  %784 = vperm.xlu0 %783, %v782
  %v785 = vpop.permute.xlu0 %784
  %vm786 = vcmp.eq.s32.totalorder %v785, 1
  %v787 = vsel %vm786, %v779, %v609
  %v788 = vsel %vm786, %v779, 0.0
  %s789 = scalar_lea.vmem %s4, 24
  %790 = vst [vmem:[%s789] sm:$0xff] %v788
  %s791 = sadd.s32 %s75, 4
  %s792 = scalar_lea.vmem %s1, 96
  %v793 = vld [vmem:[%s792] sm:$0xff]
  %v794 = vld [vmem:[%s792 + $0x8] sm:$0xff]
  %v795 = vld [vmem:[%s792 + $0x10] sm:$0xff]
  %796 = vmatprep.subr.mxu0 %v25
  %797 = vmatpush1.msra.mxu0 %v24
  %798 = vmatprep.subr.mxu0 %v28
  %799 = vmatpush1.msra.mxu0 %v27
  %800 = vmatprep.subr.mxu0 %v31
  %801 = vmatpush1.msra.mxu0 %v30
  %802 = vmatprep.subr.mxu0 %v34
  %803 = vmatpush1.msra.mxu0 %v33
  %804 = vmatprep.subr.mxu0 %v37
  %805 = vmatpush1.msra.mxu0 %v36
  %806 = vmatprep.subr.mxu0 %v40
  %807 = vmatpush1.msra.mxu0 %v39
  %808 = vmatprep.subr.mxu0 %v43
  %809 = vmatpush1.msra.mxu0 %v42
  %810 = vmatprep.subr.mxu0 %v46
  %811 = vmatpush1.msra.mxu0 %v45
  %812 = vmatprep.subr.mxu0 %v49
  %813 = vmatpush1.msra.mxu0 %v48
  %814 = vmatprep.subr.mxu0 %v52
  %815 = vmatpush1.msra.mxu0 %v51
  %816 = vmatprep.subr.mxu0 %v55
  %817 = vmatpush1.msra.mxu0 %v54
  %818 = vmatprep.subr.mxu0 %v58
  %819 = vmatpush1.msra.mxu0 %v57
  %820 = vmatprep.subr.mxu0 %v61
  %821 = vmatpush1.msra.mxu0 %v60
  %822 = vmatprep.subr.mxu0 %v64
  %823 = vmatpush1.msra.mxu0 %v63
  %824 = vmatprep.subr.mxu0 %v67
  %825 = vmatpush1.msra.mxu0 %v66
  %826 = vmatprep.subr.mxu0 %v70
  %827 = vmatpush1.msra.mxu0 %v69
  %828 = vmatprep.subr.mxu0 0.0
  %829 = vmatpush1.msra.mxu0 0.0
  %830 = vmatprep.subr.mxu0 0.0
  %831 = vmatpush1.msra.mxu0 0.0
  %832 = vmatprep.subr.mxu0 0.0
  %833 = vmatpush1.msra.mxu0 0.0
  %834 = vmatprep.subr.mxu0 0.0
  %835 = vmatpush1.msra.mxu0 0.0
  %836 = vmatprep.subr.mxu0 0.0
  %837 = vmatpush1.msra.mxu0 0.0
  %838 = vmatprep.subr.mxu0 0.0
  %839 = vmatpush1.msra.mxu0 0.0
  %840 = vmatprep.subr.mxu0 0.0
  %841 = vmatpush1.msra.mxu0 0.0
  %842 = vmatprep.subr.mxu0 0.0
  %843 = vmatpush1.msra.mxu0 0.0
  %844 = vmatprep.subr.mxu0 0.0
  %845 = vmatpush1.msra.mxu0 0.0
  %846 = vmatprep.subr.mxu0 0.0
  %847 = vmatpush1.msra.mxu0 0.0
  %848 = vmatprep.subr.mxu0 0.0
  %849 = vmatpush1.msra.mxu0 0.0
  %850 = vmatprep.subr.mxu0 0.0
  %851 = vmatpush1.msra.mxu0 0.0
  %852 = vmatprep.subr.mxu0 0.0
  %853 = vmatpush1.msra.mxu0 0.0
  %854 = vmatprep.subr.mxu0 0.0
  %855 = vmatpush1.msra.mxu0 0.0
  %856 = vmatprep.subr.mxu0 0.0
  %857 = vmatpush1.msra.mxu0 0.0
  %858 = vmatprep.subr.mxu0 0.0
  %859 = vmatpush1.msra.mxu0 0.0
  %860 = vmatprep.mubr.f32.mxu0 0.0
  %861 = vmatmul.mubr.f32.gmra.mrb[0].mxu0 %v787
  %v862 = vpop.f32.mrb[0].mxu0
  %v863 = vadd.f32 0.0, %v862
  %v864 = vpop.f32.mrb[0].mxu0
  %v865 = vadd.f32 0.0, %v864
  %866 = vdwg.mxu0
  %867 = vmatprep.subr.mxu0 0.0
  %868 = vmatpush1.msra.mxu0 %v26
  %869 = vmatprep.subr.mxu0 0.0
  %870 = vmatpush1.msra.mxu0 %v29
  %871 = vmatprep.subr.mxu0 0.0
  %872 = vmatpush1.msra.mxu0 %v32
  %873 = vmatprep.subr.mxu0 0.0
  %874 = vmatpush1.msra.mxu0 %v35
  %875 = vmatprep.subr.mxu0 0.0
  %876 = vmatpush1.msra.mxu0 %v38
  %877 = vmatprep.subr.mxu0 0.0
  %878 = vmatpush1.msra.mxu0 %v41
  %879 = vmatprep.subr.mxu0 0.0
  %880 = vmatpush1.msra.mxu0 %v44
  %881 = vmatprep.subr.mxu0 0.0
  %882 = vmatpush1.msra.mxu0 %v47
  %883 = vmatprep.subr.mxu0 0.0
  %884 = vmatpush1.msra.mxu0 %v50
  %885 = vmatprep.subr.mxu0 0.0
  %886 = vmatpush1.msra.mxu0 %v53
  %887 = vmatprep.subr.mxu0 0.0
  %888 = vmatpush1.msra.mxu0 %v56
  %889 = vmatprep.subr.mxu0 0.0
  %890 = vmatpush1.msra.mxu0 %v59
  %891 = vmatprep.subr.mxu0 0.0
  %892 = vmatpush1.msra.mxu0 %v62
  %893 = vmatprep.subr.mxu0 0.0
  %894 = vmatpush1.msra.mxu0 %v65
  %895 = vmatprep.subr.mxu0 0.0
  %896 = vmatpush1.msra.mxu0 %v68
  %897 = vmatprep.subr.mxu0 0.0
  %898 = vmatpush1.msra.mxu0 %v71
  %899 = vmatprep.subr.mxu0 0.0
  %900 = vmatpush1.msra.mxu0 0.0
  %901 = vmatprep.subr.mxu0 0.0
  %902 = vmatpush1.msra.mxu0 0.0
  %903 = vmatprep.subr.mxu0 0.0
  %904 = vmatpush1.msra.mxu0 0.0
  %905 = vmatprep.subr.mxu0 0.0
  %906 = vmatpush1.msra.mxu0 0.0
  %907 = vmatprep.subr.mxu0 0.0
  %908 = vmatpush1.msra.mxu0 0.0
  %909 = vmatprep.subr.mxu0 0.0
  %910 = vmatpush1.msra.mxu0 0.0
  %911 = vmatprep.subr.mxu0 0.0
  %912 = vmatpush1.msra.mxu0 0.0
  %913 = vmatprep.subr.mxu0 0.0
  %914 = vmatpush1.msra.mxu0 0.0
  %915 = vmatprep.subr.mxu0 0.0
  %916 = vmatpush1.msra.mxu0 0.0
  %917 = vmatprep.subr.mxu0 0.0
  %918 = vmatpush1.msra.mxu0 0.0
  %919 = vmatprep.subr.mxu0 0.0
  %920 = vmatpush1.msra.mxu0 0.0
  %921 = vmatprep.subr.mxu0 0.0
  %922 = vmatpush1.msra.mxu0 0.0
  %923 = vmatprep.subr.mxu0 0.0
  %924 = vmatpush1.msra.mxu0 0.0
  %925 = vmatprep.subr.mxu0 0.0
  %926 = vmatpush1.msra.mxu0 0.0
  %927 = vmatprep.subr.mxu0 0.0
  %928 = vmatpush1.msra.mxu0 0.0
  %929 = vmatprep.subr.mxu0 0.0
  %930 = vmatpush1.msra.mxu0 0.0
  %931 = vmatprep.mubr.f32.mxu0 0.0
  %932 = vmatmul.mubr.f32.gmra.mrb[0].mxu0 %v787
  %v933 = vpop.f32.mrb[0].mxu0
  %v934 = vadd.f32 0.0, %v933
  %v935 = vpop.f32.mrb[0].mxu0
  %936 = vdwg.mxu0
  %v937 = vadd.f32 %v793, %v863
  %v938 = vxor.u32 %v937, 2147483648
  %v939 = vmul.f32 %v938, 1.442695
  %v940 = vpow.pop %v939
  %v941 = vadd.f32 %v940, 1.0
  %v942 = vrcp.pop %v941
  %v943 = vmul.f32 1.0, %v942
  %v944 = vadd.f32 %v794, %v865
  %v945 = vxor.u32 %v944, 2147483648
  %v946 = vmul.f32 %v945, 1.442695
  %v947 = vpow.pop %v946
  %v948 = vadd.f32 %v947, 1.0
  %v949 = vrcp.pop %v948
  %v950 = vmul.f32 1.0, %v949
  %v951 = vadd.f32 %v934, %v238
  %v952 = vmul.f32 %v943, %v951
  %v953 = vadd.f32 %v795, %v952
  %v954 = vtanh.pop %v953
  %v955 = vsub.f32 %v787, %v954
  %v956 = vmul.f32 %v950, %v955
  %v957 = vadd.f32 %v954, %v956
  %v958 = vstv %s791
  %vm959 = vcmp.lt.s32.totalorder %v958, %v73
  %v960 = vsel %vm959, 1, 0
  %961 = vset.pattern.permute.xlu0 0
  %962 = vperm.xlu0 %961, %v960
  %v963 = vpop.permute.xlu0 %962
  %vm964 = vcmp.eq.s32.totalorder %v963, 1
  %v965 = vsel %vm964, %v957, %v787
  %v966 = vsel %vm964, %v957, 0.0
  %s967 = scalar_lea.vmem %s4, 32
  %968 = vst [vmem:[%s967] sm:$0xff] %v966
  %s969 = sadd.s32 %s75, 5
  %s970 = scalar_lea.vmem %s1, 120
  %v971 = vld [vmem:[%s970] sm:$0xff]
  %v972 = vld [vmem:[%s970 + $0x8] sm:$0xff]
  %v973 = vld [vmem:[%s970 + $0x10] sm:$0xff]
  %974 = vmatprep.subr.mxu0 %v25
  %975 = vmatpush1.msra.mxu0 %v24
  %976 = vmatprep.subr.mxu0 %v28
  %977 = vmatpush1.msra.mxu0 %v27
  %978 = vmatprep.subr.mxu0 %v31
  %979 = vmatpush1.msra.mxu0 %v30
  %980 = vmatprep.subr.mxu0 %v34
  %981 = vmatpush1.msra.mxu0 %v33
  %982 = vmatprep.subr.mxu0 %v37
  %983 = vmatpush1.msra.mxu0 %v36
  %984 = vmatprep.subr.mxu0 %v40
  %985 = vmatpush1.msra.mxu0 %v39
  %986 = vmatprep.subr.mxu0 %v43
  %987 = vmatpush1.msra.mxu0 %v42
  %988 = vmatprep.subr.mxu0 %v46
  %989 = vmatpush1.msra.mxu0 %v45
  %990 = vmatprep.subr.mxu0 %v49
  %991 = vmatpush1.msra.mxu0 %v48
  %992 = vmatprep.subr.mxu0 %v52
  %993 = vmatpush1.msra.mxu0 %v51
  %994 = vmatprep.subr.mxu0 %v55
  %995 = vmatpush1.msra.mxu0 %v54
  %996 = vmatprep.subr.mxu0 %v58
  %997 = vmatpush1.msra.mxu0 %v57
  %998 = vmatprep.subr.mxu0 %v61
  %999 = vmatpush1.msra.mxu0 %v60
  %1000 = vmatprep.subr.mxu0 %v64
  %1001 = vmatpush1.msra.mxu0 %v63
  %1002 = vmatprep.subr.mxu0 %v67
  %1003 = vmatpush1.msra.mxu0 %v66
  %1004 = vmatprep.subr.mxu0 %v70
  %1005 = vmatpush1.msra.mxu0 %v69
  %1006 = vmatprep.subr.mxu0 0.0
  %1007 = vmatpush1.msra.mxu0 0.0
  %1008 = vmatprep.subr.mxu0 0.0
  %1009 = vmatpush1.msra.mxu0 0.0
  %1010 = vmatprep.subr.mxu0 0.0
  %1011 = vmatpush1.msra.mxu0 0.0
  %1012 = vmatprep.subr.mxu0 0.0
  %1013 = vmatpush1.msra.mxu0 0.0
  %1014 = vmatprep.subr.mxu0 0.0
  %1015 = vmatpush1.msra.mxu0 0.0
  %1016 = vmatprep.subr.mxu0 0.0
  %1017 = vmatpush1.msra.mxu0 0.0
  %1018 = vmatprep.subr.mxu0 0.0
  %1019 = vmatpush1.msra.mxu0 0.0
  %1020 = vmatprep.subr.mxu0 0.0
  %1021 = vmatpush1.msra.mxu0 0.0
  %1022 = vmatprep.subr.mxu0 0.0
  %1023 = vmatpush1.msra.mxu0 0.0
  %1024 = vmatprep.subr.mxu0 0.0
  %1025 = vmatpush1.msra.mxu0 0.0
  %1026 = vmatprep.subr.mxu0 0.0
  %1027 = vmatpush1.msra.mxu0 0.0
  %1028 = vmatprep.subr.mxu0 0.0
  %1029 = vmatpush1.msra.mxu0 0.0
  %1030 = vmatprep.subr.mxu0 0.0
  %1031 = vmatpush1.msra.mxu0 0.0
  %1032 = vmatprep.subr.mxu0 0.0
  %1033 = vmatpush1.msra.mxu0 0.0
  %1034 = vmatprep.subr.mxu0 0.0
  %1035 = vmatpush1.msra.mxu0 0.0
  %1036 = vmatprep.subr.mxu0 0.0
  %1037 = vmatpush1.msra.mxu0 0.0
  %1038 = vmatprep.mubr.f32.mxu0 0.0
  %1039 = vmatmul.mubr.f32.gmra.mrb[0].mxu0 %v965
  %v1040 = vpop.f32.mrb[0].mxu0
  %v1041 = vadd.f32 0.0, %v1040
  %v1042 = vpop.f32.mrb[0].mxu0
  %v1043 = vadd.f32 0.0, %v1042
  %1044 = vdwg.mxu0
  %1045 = vmatprep.subr.mxu0 0.0
  %1046 = vmatpush1.msra.mxu0 %v26
  %1047 = vmatprep.subr.mxu0 0.0
  %1048 = vmatpush1.msra.mxu0 %v29
  %1049 = vmatprep.subr.mxu0 0.0
  %1050 = vmatpush1.msra.mxu0 %v32
  %1051 = vmatprep.subr.mxu0 0.0
  %1052 = vmatpush1.msra.mxu0 %v35
  %1053 = vmatprep.subr.mxu0 0.0
  %1054 = vmatpush1.msra.mxu0 %v38
  %1055 = vmatprep.subr.mxu0 0.0
  %1056 = vmatpush1.msra.mxu0 %v41
  %1057 = vmatprep.subr.mxu0 0.0
  %1058 = vmatpush1.msra.mxu0 %v44
  %1059 = vmatprep.subr.mxu0 0.0
  %1060 = vmatpush1.msra.mxu0 %v47
  %1061 = vmatprep.subr.mxu0 0.0
  %1062 = vmatpush1.msra.mxu0 %v50
  %1063 = vmatprep.subr.mxu0 0.0
  %1064 = vmatpush1.msra.mxu0 %v53
  %1065 = vmatprep.subr.mxu0 0.0
  %1066 = vmatpush1.msra.mxu0 %v56
  %1067 = vmatprep.subr.mxu0 0.0
  %1068 = vmatpush1.msra.mxu0 %v59
  %1069 = vmatprep.subr.mxu0 0.0
  %1070 = vmatpush1.msra.mxu0 %v62
  %1071 = vmatprep.subr.mxu0 0.0
  %1072 = vmatpush1.msra.mxu0 %v65
  %1073 = vmatprep.subr.mxu0 0.0
  %1074 = vmatpush1.msra.mxu0 %v68
  %1075 = vmatprep.subr.mxu0 0.0
  %1076 = vmatpush1.msra.mxu0 %v71
  %1077 = vmatprep.subr.mxu0 0.0
  %1078 = vmatpush1.msra.mxu0 0.0
  %1079 = vmatprep.subr.mxu0 0.0
  %1080 = vmatpush1.msra.mxu0 0.0
  %1081 = vmatprep.subr.mxu0 0.0
  %1082 = vmatpush1.msra.mxu0 0.0
  %1083 = vmatprep.subr.mxu0 0.0
  %1084 = vmatpush1.msra.mxu0 0.0
  %1085 = vmatprep.subr.mxu0 0.0
  %1086 = vmatpush1.msra.mxu0 0.0
  %1087 = vmatprep.subr.mxu0 0.0
  %1088 = vmatpush1.msra.mxu0 0.0
  %1089 = vmatprep.subr.mxu0 0.0
  %1090 = vmatpush1.msra.mxu0 0.0
  %1091 = vmatprep.subr.mxu0 0.0
  %1092 = vmatpush1.msra.mxu0 0.0
  %1093 = vmatprep.subr.mxu0 0.0
  %1094 = vmatpush1.msra.mxu0 0.0
  %1095 = vmatprep.subr.mxu0 0.0
  %1096 = vmatpush1.msra.mxu0 0.0
  %1097 = vmatprep.subr.mxu0 0.0
  %1098 = vmatpush1.msra.mxu0 0.0
  %1099 = vmatprep.subr.mxu0 0.0
  %1100 = vmatpush1.msra.mxu0 0.0
  %1101 = vmatprep.subr.mxu0 0.0
  %1102 = vmatpush1.msra.mxu0 0.0
  %1103 = vmatprep.subr.mxu0 0.0
  %1104 = vmatpush1.msra.mxu0 0.0
  %1105 = vmatprep.subr.mxu0 0.0
  %1106 = vmatpush1.msra.mxu0 0.0
  %1107 = vmatprep.subr.mxu0 0.0
  %1108 = vmatpush1.msra.mxu0 0.0
  %1109 = vmatprep.mubr.f32.mxu0 0.0
  %1110 = vmatmul.mubr.f32.gmra.mrb[0].mxu0 %v965
  %v1111 = vpop.f32.mrb[0].mxu0
  %v1112 = vadd.f32 0.0, %v1111
  %v1113 = vpop.f32.mrb[0].mxu0
  %1114 = vdwg.mxu0
  %v1115 = vadd.f32 %v971, %v1041
  %v1116 = vxor.u32 %v1115, 2147483648
  %v1117 = vmul.f32 %v1116, 1.442695
  %v1118 = vpow.pop %v1117
  %v1119 = vadd.f32 %v1118, 1.0
  %v1120 = vrcp.pop %v1119
  %v1121 = vmul.f32 1.0, %v1120
  %v1122 = vadd.f32 %v972, %v1043
  %v1123 = vxor.u32 %v1122, 2147483648
  %v1124 = vmul.f32 %v1123, 1.442695
  %v1125 = vpow.pop %v1124
  %v1126 = vadd.f32 %v1125, 1.0
  %v1127 = vrcp.pop %v1126
  %v1128 = vmul.f32 1.0, %v1127
  %v1129 = vadd.f32 %v1112, %v238
  %v1130 = vmul.f32 %v1121, %v1129
  %v1131 = vadd.f32 %v973, %v1130
  %v1132 = vtanh.pop %v1131
  %v1133 = vsub.f32 %v965, %v1132
  %v1134 = vmul.f32 %v1128, %v1133
  %v1135 = vadd.f32 %v1132, %v1134
  %v1136 = vstv %s969
  %vm1137 = vcmp.lt.s32.totalorder %v1136, %v73
  %v1138 = vsel %vm1137, 1, 0
  %1139 = vset.pattern.permute.xlu0 0
  %1140 = vperm.xlu0 %1139, %v1138
  %v1141 = vpop.permute.xlu0 %1140
  %vm1142 = vcmp.eq.s32.totalorder %v1141, 1
  %v1143 = vsel %vm1142, %v1135, %v965
  %v1144 = vsel %vm1142, %v1135, 0.0
  %s1145 = scalar_lea.vmem %s4, 40
  %1146 = vst [vmem:[%s1145] sm:$0xff] %v1144
  %s1147 = sadd.s32 %s75, 6
  %s1148 = scalar_lea.vmem %s1, 144
  %v1149 = vld [vmem:[%s1148] sm:$0xff]
  %v1150 = vld [vmem:[%s1148 + $0x8] sm:$0xff]
  %v1151 = vld [vmem:[%s1148 + $0x10] sm:$0xff]
  %1152 = vmatprep.subr.mxu0 %v25
  %1153 = vmatpush1.msra.mxu0 %v24
  %1154 = vmatprep.subr.mxu0 %v28
  %1155 = vmatpush1.msra.mxu0 %v27
  %1156 = vmatprep.subr.mxu0 %v31
  %1157 = vmatpush1.msra.mxu0 %v30
  %1158 = vmatprep.subr.mxu0 %v34
  %1159 = vmatpush1.msra.mxu0 %v33
  %1160 = vmatprep.subr.mxu0 %v37
  %1161 = vmatpush1.msra.mxu0 %v36
  %1162 = vmatprep.subr.mxu0 %v40
  %1163 = vmatpush1.msra.mxu0 %v39
  %1164 = vmatprep.subr.mxu0 %v43
  %1165 = vmatpush1.msra.mxu0 %v42
  %1166 = vmatprep.subr.mxu0 %v46
  %1167 = vmatpush1.msra.mxu0 %v45
  %1168 = vmatprep.subr.mxu0 %v49
  %1169 = vmatpush1.msra.mxu0 %v48
  %1170 = vmatprep.subr.mxu0 %v52
  %1171 = vmatpush1.msra.mxu0 %v51
  %1172 = vmatprep.subr.mxu0 %v55
  %1173 = vmatpush1.msra.mxu0 %v54
  %1174 = vmatprep.subr.mxu0 %v58
  %1175 = vmatpush1.msra.mxu0 %v57
  %1176 = vmatprep.subr.mxu0 %v61
  %1177 = vmatpush1.msra.mxu0 %v60
  %1178 = vmatprep.subr.mxu0 %v64
  %1179 = vmatpush1.msra.mxu0 %v63
  %1180 = vmatprep.subr.mxu0 %v67
  %1181 = vmatpush1.msra.mxu0 %v66
  %1182 = vmatprep.subr.mxu0 %v70
  %1183 = vmatpush1.msra.mxu0 %v69
  %1184 = vmatprep.subr.mxu0 0.0
  %1185 = vmatpush1.msra.mxu0 0.0
  %1186 = vmatprep.subr.mxu0 0.0
  %1187 = vmatpush1.msra.mxu0 0.0
  %1188 = vmatprep.subr.mxu0 0.0
  %1189 = vmatpush1.msra.mxu0 0.0
  %1190 = vmatprep.subr.mxu0 0.0
  %1191 = vmatpush1.msra.mxu0 0.0
  %1192 = vmatprep.subr.mxu0 0.0
  %1193 = vmatpush1.msra.mxu0 0.0
  %1194 = vmatprep.subr.mxu0 0.0
  %1195 = vmatpush1.msra.mxu0 0.0
  %1196 = vmatprep.subr.mxu0 0.0
  %1197 = vmatpush1.msra.mxu0 0.0
  %1198 = vmatprep.subr.mxu0 0.0
  %1199 = vmatpush1.msra.mxu0 0.0
  %1200 = vmatprep.subr.mxu0 0.0
  %1201 = vmatpush1.msra.mxu0 0.0
  %1202 = vmatprep.subr.mxu0 0.0
  %1203 = vmatpush1.msra.mxu0 0.0
  %1204 = vmatprep.subr.mxu0 0.0
  %1205 = vmatpush1.msra.mxu0 0.0
  %1206 = vmatprep.subr.mxu0 0.0
  %1207 = vmatpush1.msra.mxu0 0.0
  %1208 = vmatprep.subr.mxu0 0.0
  %1209 = vmatpush1.msra.mxu0 0.0
  %1210 = vmatprep.subr.mxu0 0.0
  %1211 = vmatpush1.msra.mxu0 0.0
  %1212 = vmatprep.subr.mxu0 0.0
  %1213 = vmatpush1.msra.mxu0 0.0
  %1214 = vmatprep.subr.mxu0 0.0
  %1215 = vmatpush1.msra.mxu0 0.0
  %1216 = vmatprep.mubr.f32.mxu0 0.0
  %1217 = vmatmul.mubr.f32.gmra.mrb[0].mxu0 %v1143
  %v1218 = vpop.f32.mrb[0].mxu0
  %v1219 = vadd.f32 0.0, %v1218
  %v1220 = vpop.f32.mrb[0].mxu0
  %v1221 = vadd.f32 0.0, %v1220
  %1222 = vdwg.mxu0
  %1223 = vmatprep.subr.mxu0 0.0
  %1224 = vmatpush1.msra.mxu0 %v26
  %1225 = vmatprep.subr.mxu0 0.0
  %1226 = vmatpush1.msra.mxu0 %v29
  %1227 = vmatprep.subr.mxu0 0.0
  %1228 = vmatpush1.msra.mxu0 %v32
  %1229 = vmatprep.subr.mxu0 0.0
  %1230 = vmatpush1.msra.mxu0 %v35
  %1231 = vmatprep.subr.mxu0 0.0
  %1232 = vmatpush1.msra.mxu0 %v38
  %1233 = vmatprep.subr.mxu0 0.0
  %1234 = vmatpush1.msra.mxu0 %v41
  %1235 = vmatprep.subr.mxu0 0.0
  %1236 = vmatpush1.msra.mxu0 %v44
  %1237 = vmatprep.subr.mxu0 0.0
  %1238 = vmatpush1.msra.mxu0 %v47
  %1239 = vmatprep.subr.mxu0 0.0
  %1240 = vmatpush1.msra.mxu0 %v50
  %1241 = vmatprep.subr.mxu0 0.0
  %1242 = vmatpush1.msra.mxu0 %v53
  %1243 = vmatprep.subr.mxu0 0.0
  %1244 = vmatpush1.msra.mxu0 %v56
  %1245 = vmatprep.subr.mxu0 0.0
  %1246 = vmatpush1.msra.mxu0 %v59
  %1247 = vmatprep.subr.mxu0 0.0
  %1248 = vmatpush1.msra.mxu0 %v62
  %1249 = vmatprep.subr.mxu0 0.0
  %1250 = vmatpush1.msra.mxu0 %v65
  %1251 = vmatprep.subr.mxu0 0.0
  %1252 = vmatpush1.msra.mxu0 %v68
  %1253 = vmatprep.subr.mxu0 0.0
  %1254 = vmatpush1.msra.mxu0 %v71
  %1255 = vmatprep.subr.mxu0 0.0
  %1256 = vmatpush1.msra.mxu0 0.0
  %1257 = vmatprep.subr.mxu0 0.0
  %1258 = vmatpush1.msra.mxu0 0.0
  %1259 = vmatprep.subr.mxu0 0.0
  %1260 = vmatpush1.msra.mxu0 0.0
  %1261 = vmatprep.subr.mxu0 0.0
  %1262 = vmatpush1.msra.mxu0 0.0
  %1263 = vmatprep.subr.mxu0 0.0
  %1264 = vmatpush1.msra.mxu0 0.0
  %1265 = vmatprep.subr.mxu0 0.0
  %1266 = vmatpush1.msra.mxu0 0.0
  %1267 = vmatprep.subr.mxu0 0.0
  %1268 = vmatpush1.msra.mxu0 0.0
  %1269 = vmatprep.subr.mxu0 0.0
  %1270 = vmatpush1.msra.mxu0 0.0
  %1271 = vmatprep.subr.mxu0 0.0
  %1272 = vmatpush1.msra.mxu0 0.0
  %1273 = vmatprep.subr.mxu0 0.0
  %1274 = vmatpush1.msra.mxu0 0.0
  %1275 = vmatprep.subr.mxu0 0.0
  %1276 = vmatpush1.msra.mxu0 0.0
  %1277 = vmatprep.subr.mxu0 0.0
  %1278 = vmatpush1.msra.mxu0 0.0
  %1279 = vmatprep.subr.mxu0 0.0
  %1280 = vmatpush1.msra.mxu0 0.0
  %1281 = vmatprep.subr.mxu0 0.0
  %1282 = vmatpush1.msra.mxu0 0.0
  %1283 = vmatprep.subr.mxu0 0.0
  %1284 = vmatpush1.msra.mxu0 0.0
  %1285 = vmatprep.subr.mxu0 0.0
  %1286 = vmatpush1.msra.mxu0 0.0
  %1287 = vmatprep.mubr.f32.mxu0 0.0
  %1288 = vmatmul.mubr.f32.gmra.mrb[0].mxu0 %v1143
  %v1289 = vpop.f32.mrb[0].mxu0
  %v1290 = vadd.f32 0.0, %v1289
  %v1291 = vpop.f32.mrb[0].mxu0
  %1292 = vdwg.mxu0
  %v1293 = vadd.f32 %v1149, %v1219
  %v1294 = vxor.u32 %v1293, 2147483648
  %v1295 = vmul.f32 %v1294, 1.442695
  %v1296 = vpow.pop %v1295
  %v1297 = vadd.f32 %v1296, 1.0
  %v1298 = vrcp.pop %v1297
  %v1299 = vmul.f32 1.0, %v1298
  %v1300 = vadd.f32 %v1150, %v1221
  %v1301 = vxor.u32 %v1300, 2147483648
  %v1302 = vmul.f32 %v1301, 1.442695
  %v1303 = vpow.pop %v1302
  %v1304 = vadd.f32 %v1303, 1.0
  %v1305 = vrcp.pop %v1304
  %v1306 = vmul.f32 1.0, %v1305
  %v1307 = vadd.f32 %v1290, %v238
  %v1308 = vmul.f32 %v1299, %v1307
  %v1309 = vadd.f32 %v1151, %v1308
  %v1310 = vtanh.pop %v1309
  %v1311 = vsub.f32 %v1143, %v1310
  %v1312 = vmul.f32 %v1306, %v1311
  %v1313 = vadd.f32 %v1310, %v1312
  %v1314 = vstv %s1147
  %vm1315 = vcmp.lt.s32.totalorder %v1314, %v73
  %v1316 = vsel %vm1315, 1, 0
  %1317 = vset.pattern.permute.xlu0 0
  %1318 = vperm.xlu0 %1317, %v1316
  %v1319 = vpop.permute.xlu0 %1318
  %vm1320 = vcmp.eq.s32.totalorder %v1319, 1
  %v1321 = vsel %vm1320, %v1313, %v1143
  %v1322 = vsel %vm1320, %v1313, 0.0
  %s1323 = scalar_lea.vmem %s4, 48
  %1324 = vst [vmem:[%s1323] sm:$0xff] %v1322
  %s1325 = sadd.s32 %s75, 7
  %s1326 = scalar_lea.vmem %s1, 168
  %v1327 = vld [vmem:[%s1326] sm:$0xff]
  %v1328 = vld [vmem:[%s1326 + $0x8] sm:$0xff]
  %v1329 = vld [vmem:[%s1326 + $0x10] sm:$0xff]
  %1330 = vmatprep.subr.mxu0 %v25
  %1331 = vmatpush1.msra.mxu0 %v24
  %1332 = vmatprep.subr.mxu0 %v28
  %1333 = vmatpush1.msra.mxu0 %v27
  %1334 = vmatprep.subr.mxu0 %v31
  %1335 = vmatpush1.msra.mxu0 %v30
  %1336 = vmatprep.subr.mxu0 %v34
  %1337 = vmatpush1.msra.mxu0 %v33
  %1338 = vmatprep.subr.mxu0 %v37
  %1339 = vmatpush1.msra.mxu0 %v36
  %1340 = vmatprep.subr.mxu0 %v40
  %1341 = vmatpush1.msra.mxu0 %v39
  %1342 = vmatprep.subr.mxu0 %v43
  %1343 = vmatpush1.msra.mxu0 %v42
  %1344 = vmatprep.subr.mxu0 %v46
  %1345 = vmatpush1.msra.mxu0 %v45
  %1346 = vmatprep.subr.mxu0 %v49
  %1347 = vmatpush1.msra.mxu0 %v48
  %1348 = vmatprep.subr.mxu0 %v52
  %1349 = vmatpush1.msra.mxu0 %v51
  %1350 = vmatprep.subr.mxu0 %v55
  %1351 = vmatpush1.msra.mxu0 %v54
  %1352 = vmatprep.subr.mxu0 %v58
  %1353 = vmatpush1.msra.mxu0 %v57
  %1354 = vmatprep.subr.mxu0 %v61
  %1355 = vmatpush1.msra.mxu0 %v60
  %1356 = vmatprep.subr.mxu0 %v64
  %1357 = vmatpush1.msra.mxu0 %v63
  %1358 = vmatprep.subr.mxu0 %v67
  %1359 = vmatpush1.msra.mxu0 %v66
  %1360 = vmatprep.subr.mxu0 %v70
  %1361 = vmatpush1.msra.mxu0 %v69
  %1362 = vmatprep.subr.mxu0 0.0
  %1363 = vmatpush1.msra.mxu0 0.0
  %1364 = vmatprep.subr.mxu0 0.0
  %1365 = vmatpush1.msra.mxu0 0.0
  %1366 = vmatprep.subr.mxu0 0.0
  %1367 = vmatpush1.msra.mxu0 0.0
  %1368 = vmatprep.subr.mxu0 0.0
  %1369 = vmatpush1.msra.mxu0 0.0
  %1370 = vmatprep.subr.mxu0 0.0
  %1371 = vmatpush1.msra.mxu0 0.0
  %1372 = vmatprep.subr.mxu0 0.0
  %1373 = vmatpush1.msra.mxu0 0.0
  %1374 = vmatprep.subr.mxu0 0.0
  %1375 = vmatpush1.msra.mxu0 0.0
  %1376 = vmatprep.subr.mxu0 0.0
  %1377 = vmatpush1.msra.mxu0 0.0
  %1378 = vmatprep.subr.mxu0 0.0
  %1379 = vmatpush1.msra.mxu0 0.0
  %1380 = vmatprep.subr.mxu0 0.0
  %1381 = vmatpush1.msra.mxu0 0.0
  %1382 = vmatprep.subr.mxu0 0.0
  %1383 = vmatpush1.msra.mxu0 0.0
  %1384 = vmatprep.subr.mxu0 0.0
  %1385 = vmatpush1.msra.mxu0 0.0
  %1386 = vmatprep.subr.mxu0 0.0
  %1387 = vmatpush1.msra.mxu0 0.0
  %1388 = vmatprep.subr.mxu0 0.0
  %1389 = vmatpush1.msra.mxu0 0.0
  %1390 = vmatprep.subr.mxu0 0.0
  %1391 = vmatpush1.msra.mxu0 0.0
  %1392 = vmatprep.subr.mxu0 0.0
  %1393 = vmatpush1.msra.mxu0 0.0
  %1394 = vmatprep.mubr.f32.mxu0 0.0
  %1395 = vmatmul.mubr.f32.gmra.mrb[0].mxu0 %v1321
  %v1396 = vpop.f32.mrb[0].mxu0
  %v1397 = vadd.f32 0.0, %v1396
  %v1398 = vpop.f32.mrb[0].mxu0
  %v1399 = vadd.f32 0.0, %v1398
  %1400 = vdwg.mxu0
  %1401 = vmatprep.subr.mxu0 0.0
  %1402 = vmatpush1.msra.mxu0 %v26
  %1403 = vmatprep.subr.mxu0 0.0
  %1404 = vmatpush1.msra.mxu0 %v29
  %1405 = vmatprep.subr.mxu0 0.0
  %1406 = vmatpush1.msra.mxu0 %v32
  %1407 = vmatprep.subr.mxu0 0.0
  %1408 = vmatpush1.msra.mxu0 %v35
  %1409 = vmatprep.subr.mxu0 0.0
  %1410 = vmatpush1.msra.mxu0 %v38
  %1411 = vmatprep.subr.mxu0 0.0
  %1412 = vmatpush1.msra.mxu0 %v41
  %1413 = vmatprep.subr.mxu0 0.0
  %1414 = vmatpush1.msra.mxu0 %v44
  %1415 = vmatprep.subr.mxu0 0.0
  %1416 = vmatpush1.msra.mxu0 %v47
  %1417 = vmatprep.subr.mxu0 0.0
  %1418 = vmatpush1.msra.mxu0 %v50
  %1419 = vmatprep.subr.mxu0 0.0
  %1420 = vmatpush1.msra.mxu0 %v53
  %1421 = vmatprep.subr.mxu0 0.0
  %1422 = vmatpush1.msra.mxu0 %v56
  %1423 = vmatprep.subr.mxu0 0.0
  %1424 = vmatpush1.msra.mxu0 %v59
  %1425 = vmatprep.subr.mxu0 0.0
  %1426 = vmatpush1.msra.mxu0 %v62
  %1427 = vmatprep.subr.mxu0 0.0
  %1428 = vmatpush1.msra.mxu0 %v65
  %1429 = vmatprep.subr.mxu0 0.0
  %1430 = vmatpush1.msra.mxu0 %v68
  %1431 = vmatprep.subr.mxu0 0.0
  %1432 = vmatpush1.msra.mxu0 %v71
  %1433 = vmatprep.subr.mxu0 0.0
  %1434 = vmatpush1.msra.mxu0 0.0
  %1435 = vmatprep.subr.mxu0 0.0
  %1436 = vmatpush1.msra.mxu0 0.0
  %1437 = vmatprep.subr.mxu0 0.0
  %1438 = vmatpush1.msra.mxu0 0.0
  %1439 = vmatprep.subr.mxu0 0.0
  %1440 = vmatpush1.msra.mxu0 0.0
  %1441 = vmatprep.subr.mxu0 0.0
  %1442 = vmatpush1.msra.mxu0 0.0
  %1443 = vmatprep.subr.mxu0 0.0
  %1444 = vmatpush1.msra.mxu0 0.0
  %1445 = vmatprep.subr.mxu0 0.0
  %1446 = vmatpush1.msra.mxu0 0.0
  %1447 = vmatprep.subr.mxu0 0.0
  %1448 = vmatpush1.msra.mxu0 0.0
  %1449 = vmatprep.subr.mxu0 0.0
  %1450 = vmatpush1.msra.mxu0 0.0
  %1451 = vmatprep.subr.mxu0 0.0
  %1452 = vmatpush1.msra.mxu0 0.0
  %1453 = vmatprep.subr.mxu0 0.0
  %1454 = vmatpush1.msra.mxu0 0.0
  %1455 = vmatprep.subr.mxu0 0.0
  %1456 = vmatpush1.msra.mxu0 0.0
  %1457 = vmatprep.subr.mxu0 0.0
  %1458 = vmatpush1.msra.mxu0 0.0
  %1459 = vmatprep.subr.mxu0 0.0
  %1460 = vmatpush1.msra.mxu0 0.0
  %1461 = vmatprep.subr.mxu0 0.0
  %1462 = vmatpush1.msra.mxu0 0.0
  %1463 = vmatprep.subr.mxu0 0.0
  %1464 = vmatpush1.msra.mxu0 0.0
  %1465 = vmatprep.mubr.f32.mxu0 0.0
  %1466 = vmatmul.mubr.f32.gmra.mrb[0].mxu0 %v1321
  %v1467 = vpop.f32.mrb[0].mxu0
  %v1468 = vadd.f32 0.0, %v1467
  %v1469 = vpop.f32.mrb[0].mxu0
  %1470 = vdwg.mxu0
  %v1471 = vadd.f32 %v1327, %v1397
  %v1472 = vxor.u32 %v1471, 2147483648
  %v1473 = vmul.f32 %v1472, 1.442695
  %v1474 = vpow.pop %v1473
  %v1475 = vadd.f32 %v1474, 1.0
  %v1476 = vrcp.pop %v1475
  %v1477 = vmul.f32 1.0, %v1476
  %v1478 = vadd.f32 %v1328, %v1399
  %v1479 = vxor.u32 %v1478, 2147483648
  %v1480 = vmul.f32 %v1479, 1.442695
  %v1481 = vpow.pop %v1480
  %v1482 = vadd.f32 %v1481, 1.0
  %v1483 = vrcp.pop %v1482
  %v1484 = vmul.f32 1.0, %v1483
  %v1485 = vadd.f32 %v1468, %v238
  %v1486 = vmul.f32 %v1477, %v1485
  %v1487 = vadd.f32 %v1329, %v1486
  %v1488 = vtanh.pop %v1487
  %v1489 = vsub.f32 %v1321, %v1488
  %v1490 = vmul.f32 %v1484, %v1489
  %v1491 = vadd.f32 %v1488, %v1490
  %v1492 = vstv %s1325
  %vm1493 = vcmp.lt.s32.totalorder %v1492, %v73
  %v1494 = vsel %vm1493, 1, 0
  %1495 = vset.pattern.permute.xlu0 0
  %1496 = vperm.xlu0 %1495, %v1494
  %v1497 = vpop.permute.xlu0 %1496
  %vm1498 = vcmp.eq.s32.totalorder %v1497, 1
  %v1499 = vsel %vm1498, %v1491, %v1321
  %v1500 = vsel %vm1498, %v1491, 0.0
  %s1501 = scalar_lea.vmem %s4, 56
  %1502 = vst [vmem:[%s1501] sm:$0xff] %v1500
  %1503 = vst [vmem:[#allocation2] sm:$0xff] %v1499
  // Predicated region
  $region22: #{gru_encoder_forward.1} parent=0 // pred_check
    %p1504 = pneg %p19
  $region23: #{gru_encoder_forward.1} parent=0 // pred_check_branch
    %1506 = sbr.rel (%p1504) target = $region25
  $region24: #{gru_encoder_forward.1} parent=0 // pred_region
    %1507 = vst [vmem:[%s5] sm:$0xff] %v1499
  $region25: #{gru_encoder_forward.1} parent=0 // pred_fallthru
    _
  // Predicated region
  $region26: #{gru_encoder_forward.1} parent=0 // pred_check
    _
  $region27: #{gru_encoder_forward.1} parent=0 // pred_check_branch
    %1509 = sbr.rel (0) target = $region29
  $region28: #{gru_encoder_forward.1} parent=0 // pred_region
    _
  $region29: #{gru_encoder_forward.1} parent=0 // pred_fallthru
    _
  // Predicated region
  $region30: #{gru_encoder_forward.1} parent=0 // pred_check
    _
  $region31: #{gru_encoder_forward.1} parent=0 // pred_check_branch
    %1511 = sbr.rel (0) target = $region33
  $region32: #{gru_encoder_forward.1} parent=0 // pred_region
    _
  $region33: #{gru_encoder_forward.1} parent=0 // pred_fallthru
    _
  // Predicated region
  $region34: #{gru_encoder_forward.1} parent=0 // pred_check
    _
  $region35: #{gru_encoder_forward.1} parent=0 // pred_check_branch
    %1513 = sbr.rel (0) target = $region37
  $region36: #{gru_encoder_forward.1} parent=0 // pred_region
    _
  $region37: #{gru_encoder_forward.1} parent=0 // pred_fallthru
    _
  // Predicated region
  $region38: #{gru_encoder_forward.1} parent=0 // pred_check
    _
  $region39: #{gru_encoder_forward.1} parent=0 // pred_check_branch
    %1515 = sbr.rel (0) target = $region41
  $region40: #{gru_encoder_forward.1} parent=0 // pred_region
    _
  $region41: #{gru_encoder_forward.1} parent=0 // pred_fallthru
    _

</llo_original>
